<compile_context>
chip_gen: v7x
topology: tpu7x:2x2x1
jax: 0.10.0
libtpu: 0.0.40
codegen_flags: <defaults>
</compile_context>

<pallas_src>
import math

import jax
import jax.numpy as jnp
from jax.experimental import pallas as pl
from jax.experimental.pallas import tpu as pltpu


# ---------------------------------------------------------------------------
# Weight folding: nearest-2x upsample + 3x3 conv  ==  per-parity 2x2 conv
# ---------------------------------------------------------------------------
def _fold_taps(w3, parity):
    """Fold the 3 conv taps into 2 along axis 0 for one output parity.

    With nearest-2x duplication the three 3x3 taps of an output pixel hit only two
    distinct source pixels per axis; taps hitting the same source pixel are pre-summed.
    parity 0: (k0, k1+k2); parity 1: (k0+k1, k2).
    """
    if parity == 0:
        return jnp.stack([w3[0], w3[1] + w3[2]], axis=0)
    return jnp.stack([w3[0] + w3[1], w3[2]], axis=0)


def _build_stacked_weights(weight_oihw):
    """(Cout, Cin, 3, 3) -> (2, 2*Cin, 4*Cout) parity-folded, column-stacked weights.

    For row parity p, the (2*Cin, 4*Cout) slab is indexed (a, ci) on rows [a = folded
    row tap] and (b, q, co) on columns [b = folded column tap, q = output-column
    parity].  One dot per output-row parity then produces all column taps / parities
    at once, keeping the MXU N dimension at 4*Cout (>= 256 even for Cout = 128).
    """
    cout, cin = weight_oihw.shape[0], weight_oihw.shape[1]
    w = jnp.transpose(weight_oihw, (2, 3, 1, 0)).astype(jnp.float32)  # (dy, dx, ci, co)
    slabs = []
    for p in range(2):
        wr = _fold_taps(w, p)                                # (a, dx, ci, co)
        per_q = []
        for q in range(2):
            wc = _fold_taps(jnp.moveaxis(wr, 1, 0), q)       # (b, a, ci, co)
            per_q.append(jnp.moveaxis(wc, 0, 1))             # (a, b, ci, co)
        wq = jnp.stack(per_q, axis=3)                        # (a, b, ci, q, co)
        wq = jnp.transpose(wq, (0, 2, 1, 3, 4))              # (a, ci, b, q, co)
        slabs.append(wq.reshape(2 * cin, 4 * cout))
    return jnp.stack(slabs, axis=0)                          # (2, 2*Cin, 4*Cout)


# ---------------------------------------------------------------------------
# Kernel
# ---------------------------------------------------------------------------
def _upsample_conv_kernel(top_ref, body_ref, bot_ref, w_ref, b_ref, o_ref, slab_ref):
    # top_ref  : (1, 1,  W, C)    input row  t*RH - 1 (clamped; zeroed when t == 0)
    # body_ref : (1, RH, W, C)    input rows [t*RH, (t+1)*RH)
    # bot_ref  : (1, 1,  W, C)    input row  (t+1)*RH (clamped; zeroed when t == T-1)
    # w_ref    : (2, 2*C, 4*Cout) parity-folded stacked weights
    # b_ref    : (1, 2*Cout)      bias tiled for the two column parities
    # o_ref    : (1, RH, 2, W, 2*Cout) -> reshaped to (N, 2H, 2W, Cout) outside
    # slab_ref : (RH+2, Wpad, C)  VMEM scratch: zero-padded tile in compute dtype
    RH = body_ref.shape[1]
    W = body_ref.shape[2]
    C = body_ref.shape[3]
    Wpad = slab_ref.shape[1]
    Cout = o_ref.shape[4] // 2
    cdt = slab_ref.dtype

    t = pl.program_id(1)
    last = pl.num_programs(1) - 1

    # --- build the zero-padded input slab in VMEM (pad never touches HBM) ---------
    slab_ref[:, 0:1, :] = jnp.zeros((RH + 2, 1, C), cdt)                       # left pad
    slab_ref[:, W + 1:Wpad, :] = jnp.zeros((RH + 2, Wpad - W - 1, C), cdt)     # right pad
    top = (jnp.where(t == 0, 0.0, 1.0) * top_ref[0, 0]).astype(cdt)
    bot = (jnp.where(t == last, 0.0, 1.0) * bot_ref[0, 0]).astype(cdt)
    slab_ref[0, 1:W + 1, :] = top
    slab_ref[RH + 1, 1:W + 1, :] = bot
    slab_ref[1:RH + 1, 1:W + 1, :] = body_ref[0].astype(cdt)   # in-kernel bf16 cast

    bias = b_ref[0][None, None, :].astype(jnp.float32)         # (1, 1, 2*Cout)

    # --- one deep MXU dot per output-row parity -----------------------------------
    for p in range(2):
        # Both folded row taps lane-concatenated: K = 2*C.
        rowcat = jnp.concatenate(
            [slab_ref[p:p + RH, :, :], slab_ref[p + 1:p + RH + 1, :, :]], axis=-1)
        y = jnp.dot(rowcat.reshape(RH * Wpad, 2 * C), w_ref[p],
                    preferred_element_type=jnp.float32)        # (RH*Wpad, 4*Cout), f32
        y = y.reshape(RH, Wpad, 4 * Cout)
        # y channel layout is (b, q, co); combine the two column taps with the
        # appropriate column shift for each output-column parity q.
        q0 = y[:, 0:W, 0:Cout] + y[:, 1:W + 1, 2 * Cout:3 * Cout]
        q1 = y[:, 1:W + 1, Cout:2 * Cout] + y[:, 2:W + 2, 3 * Cout:4 * Cout]
        res = jnp.concatenate([q0, q1], axis=-1) + bias        # (RH, W, 2*Cout)
        o_ref[0, :, p, :, :] = res.astype(o_ref.dtype)


# ---------------------------------------------------------------------------
# Tile sizing (per-generation VMEM budget)
# ---------------------------------------------------------------------------
def _round_up(x, m):
    return ((x + m - 1) // m) * m


def _largest_divisor_leq(n, cap):
    cap = max(1, min(cap, n))
    for d in range(cap, 0, -1):
        if n % d == 0:
            return d
    return 1


def _vmem_caps():
    """(tile-sizing budget, vmem_limit_bytes) gated by the actual TPU generation."""
    cap = 128 * 1024 * 1024                       # v5e / v6e physical VMEM
    try:
        cap = int(pltpu.get_tpu_info().vmem_capacity_bytes)   # 64 MiB per TC on v7x
    except Exception:
        pass
    limit = (3 * cap) // 4                        # ~96 MiB on v5e/v6e, ~48 MiB on v7x
    budget = cap // 2                             # working-set target for RH selection
    return budget, limit


def _pick_row_block(N, H, W, C, Cout, in_b, out_b, cdt_b, budget):
    """Largest divisor of H whose per-tile working set fits the VMEM budget."""
    wpad = _round_up(W + 2, 8)
    per_row = (
        2 * W * C * in_b                 # double-buffered body input block
        + wpad * C * cdt_b               # scratch slab
        + wpad * 2 * C * cdt_b           # rowcat dot operand
        + wpad * 4 * Cout * 4            # f32 dot result y
        + 4 * W * Cout * 4               # q0/q1 + concat temporaries (f32)
        + 8 * W * Cout * out_b           # double-buffered output block
    )
    fixed = (
        4 * (2 * C) * (4 * Cout) * cdt_b     # resident (double-buffered) folded weights
        + 4 * W * C * in_b                   # halo row blocks
        + (1 << 20)                          # misc slack
    )
    target = max(1, (budget - fixed) // per_row)
    rh = _largest_divisor_leq(H, target)
    # Keep at least two grid steps so both v7x TensorCores get work.
    if N * (H // rh) < 2 and H >= 2:
        rh = _largest_divisor_leq(H, min(target, H // 2))
    return rh


# ---------------------------------------------------------------------------
# Wrappers
# ---------------------------------------------------------------------------
def upsample_forward_nhwc(x_nhwc, weight_oihw, bias, *, row_block=None,
                          compute_dtype=jnp.bfloat16, vmem_limit_bytes=None):
    """NHWC-native UpSample.forward: nearest-2x upsample fused into the 3x3 conv."""
    N, H, W, C = x_nhwc.shape
    Cout = weight_oihw.shape[0]
    assert weight_oihw.shape == (Cout, C, 3, 3)
    # TODO(synk): for very large C on v7x (64 MiB VMEM), add a Cout grid axis so the
    # resident folded-weight block and the output blocks stay within budget.

    budget, limit = _vmem_caps()
    if vmem_limit_bytes is None:
        vmem_limit_bytes = limit
    in_b = jnp.dtype(x_nhwc.dtype).itemsize
    cdt_b = jnp.dtype(compute_dtype).itemsize
    if row_block is None:
        RH = _pick_row_block(N, H, W, C, Cout, in_b, in_b, cdt_b, budget)
    else:
        RH = row_block
    assert H % RH == 0, (H, RH)
    T = H // RH
    wpad = _round_up(W + 2, 8)   # keep the dot's flattened M dim sublane-aligned

    wstk = _build_stacked_weights(weight_oihw).astype(compute_dtype)   # (2, 2C, 4Cout)
    b2 = jnp.concatenate([bias, bias]).reshape(1, 2 * Cout).astype(jnp.float32)

    out5 = pl.pallas_call(
        _upsample_conv_kernel,
        out_shape=jax.ShapeDtypeStruct((N, H, 2, W, 2 * Cout), x_nhwc.dtype),
        grid=(N, T),
        in_specs=[
            # 1-row top / bottom halos (clamped at the image edge, zeroed in-kernel).
            pl.BlockSpec((1, 1, W, C),
                         lambda n, t: (n, jnp.maximum(t * RH - 1, 0), 0, 0)),
            pl.BlockSpec((1, RH, W, C), lambda n, t: (n, t, 0, 0)),
            pl.BlockSpec((1, 1, W, C),
                         lambda n, t: (n, jnp.minimum((t + 1) * RH, H - 1), 0, 0)),
            pl.BlockSpec((2, 2 * C, 4 * Cout), lambda n, t: (0, 0, 0)),
            pl.BlockSpec((1, 2 * Cout), lambda n, t: (0, 0)),
        ],
        out_specs=pl.BlockSpec((1, RH, 2, W, 2 * Cout),
                               lambda n, t: (n, t, 0, 0, 0)),
        scratch_shapes=[pltpu.VMEM((RH + 2, wpad, C), compute_dtype)],
        compiler_params=pltpu.CompilerParams(
            dimension_semantics=("parallel", "parallel"),
            vmem_limit_bytes=vmem_limit_bytes,
        ),
    )(x_nhwc, x_nhwc, x_nhwc, wstk, b2)

    # (N, H, 2, W, 2*Cout) -> (N, 2H, 2W, Cout): preserves the linear element order.
    # TODO(synk): confirm with xprof that XLA does not emit a relayout copy here; if it
    # does, consume the 5-D blocked layout downstream or interleave columns in-kernel.
    return out5.reshape(N, 2 * H, 2 * W, Cout)


def upsample_forward(x_nchw, weight_oihw, bias, temb=None, *, row_block=None,
                     compute_dtype=jnp.bfloat16):
    """PyTorch-layout wrapper: x (N, C, H, W) -> (N, C, 2H, 2W).  `temb` is accepted
    and ignored, exactly as in UpSample.forward(x, temb)."""
    del temb
    x_nhwc = jnp.transpose(x_nchw, (0, 2, 3, 1))
    out_nhwc = upsample_forward_nhwc(x_nhwc, weight_oihw, bias, row_block=row_block,
                                     compute_dtype=compute_dtype)
    return jnp.transpose(out_nhwc, (0, 3, 1, 2))


def init_upsample_params(in_ch, key):
    """Matches UpSample.initialize(): xavier_uniform_ on conv weight, zeros on bias."""
    fan_in = in_ch * 3 * 3
    fan_out = in_ch * 3 * 3
    bound = math.sqrt(6.0 / (fan_in + fan_out))
    weight = jax.random.uniform(
        key, (in_ch, in_ch, 3, 3), minval=-bound, maxval=bound, dtype=jnp.float32)
    bias = jnp.zeros((in_ch,), dtype=jnp.float32)
    return weight, bias


# ---------------------------------------------------------------------------
# Self-test
# ---------------------------------------------------------------------------
if __name__ == "__main__":
    key = jax.random.PRNGKey(0)
    k_x, k_w = jax.random.split(key, 2)

    N, C, H, W = 2, 4, 16, 16
    x = jax.random.normal(k_x, (N, C, H, W), dtype=jnp.float32)
    temb = jnp.zeros((N, 32), dtype=jnp.float32)        # unused by UpSample.forward
    weight, bias = init_upsample_params(C, k_w)

    # Reference: XLA conv on the nearest-upsampled input (not part of the kernel path).
    x_up = jnp.repeat(jnp.repeat(x, 2, axis=2), 2, axis=3)
    ref = jax.lax.conv_general_dilated(
        x_up, weight, window_strides=(1, 1), padding=((1, 1), (1, 1)),
        dimension_numbers=("NCHW", "OIHW", "NCHW"),
    ) + bias.reshape(1, C, 1, 1)

    # f32 compute path: exact check; row_block=8 exercises row tiling + halo clamping,
    # row_block=None exercises the per-generation auto tile sizing.
    for rb in (8, None):
        out = upsample_forward(x, weight, bias, temb, row_block=rb,
                               compute_dtype=jnp.float32)
        out = jax.block_until_ready(out)
        assert out.shape == (N, C, 2 * H, 2 * W)
        err = float(jnp.max(jnp.abs(out - ref)))
        assert err < 1e-4, (rb, err)

    # bf16 default path (production dtype: native MXU bf16 passes, f32 accumulation).
    out_bf = jax.block_until_ready(
        upsample_forward(x, weight, bias, temb, row_block=4))
    err_bf = float(jnp.max(jnp.abs(out_bf - ref)))
    assert err_bf < 1e-1, err_bf

    print("KERNEL_OK")
</pallas_src>

<mosaic_0001>
module attributes {stable_mosaic.version = 11 : i64} {
  func.func @_upsample_conv_kernel(%arg0: i32, %arg1: i32, %arg2: memref<1x1x16x4xf32, #tpu.memory_space<vmem>>, %arg3: memref<1x8x16x4xf32, #tpu.memory_space<vmem>>, %arg4: memref<1x1x16x4xf32, #tpu.memory_space<vmem>>, %arg5: memref<2x8x16xf32, #tpu.memory_space<vmem>>, %arg6: memref<1x8xf32, #tpu.memory_space<vmem>>, %arg7: memref<1x8x2x16x8xf32, #tpu.memory_space<vmem>>, %arg8: memref<10x24x4xf32, #tpu.memory_space<vmem>>) attributes {dimension_semantics = [#tpu.dimension_semantics<parallel>, #tpu.dimension_semantics<parallel>], iteration_bounds = array<i64: 2, 2>, scalar_prefetch = 0 : i64, scratch_operands = 1 : i64, tpu.core_type = #tpu.core_type<tc>, window_params = [{transform_indices = @transform_0, window_bounds = array<i64: 1, 1, 16, 4>}, {transform_indices = @transform_1, window_bounds = array<i64: 1, 8, 16, 4>}, {transform_indices = @transform_2, window_bounds = array<i64: 1, 1, 16, 4>}, {pipeline_mode = #tpu.pipeline_mode<synchronous>, transform_indices = @transform_3, window_bounds = array<i64: 2, 8, 16>}, {pipeline_mode = #tpu.pipeline_mode<synchronous>, transform_indices = @transform_4, window_bounds = array<i64: 1, 8>}, {transform_indices = @transform_5, window_bounds = array<i64: 1, 8, 2, 16, 8>}]} {
    %cst = arith.constant 0.000000e+00 : f32
    %0 = vector.broadcast %cst : f32 to vector<10x1x4xf32>
    %c0 = arith.constant 0 : index
    %c0_0 = arith.constant 0 : index
    %c0_1 = arith.constant 0 : index
    %1 = vector.load %arg8[%c0, %c0_0, %c0_1] : memref<10x24x4xf32, #tpu.memory_space<vmem>>, vector<10x1x4xf32>
    tpu.vector_store %arg8[%c0, %c0_0, %c0_1], %0 {strides = array<i32>} : memref<10x24x4xf32, #tpu.memory_space<vmem>>, vector<10x1x4xf32>,
    %cst_2 = arith.constant 0.000000e+00 : f32
    %2 = vector.broadcast %cst_2 : f32 to vector<10x7x4xf32>
    %c0_3 = arith.constant 0 : index
    %c17 = arith.constant 17 : index
    %c0_4 = arith.constant 0 : index
    %3 = vector.load %arg8[%c0_3, %c17, %c0_4] : memref<10x24x4xf32, #tpu.memory_space<vmem>>, vector<10x7x4xf32>
    tpu.vector_store %arg8[%c0_3, %c17, %c0_4], %2 {strides = array<i32>} : memref<10x24x4xf32, #tpu.memory_space<vmem>>, vector<10x7x4xf32>,
    %c0_i32 = arith.constant 0 : i32
    %4 = arith.cmpi eq, %arg1, %c0_i32 : i32
    %cst_5 = arith.constant 0.000000e+00 : f32
    %cst_6 = arith.constant 1.000000e+00 : f32
    %5 = arith.select %4, %cst_5, %cst_6 : f32
    %c0_7 = arith.constant 0 : index
    %c0_8 = arith.constant 0 : index
    %c0_9 = arith.constant 0 : index
    %c0_10 = arith.constant 0 : index
    %6 = vector.load %arg2[%c0_7, %c0_8, %c0_9, %c0_10] : memref<1x1x16x4xf32, #tpu.memory_space<vmem>>, vector<1x1x16x4xf32>
    %7 = vector.shape_cast %6 : vector<1x1x16x4xf32> to vector<16x4xf32>
    %8 = vector.broadcast %5 : f32 to vector<16x4xf32>
    %9 = arith.mulf %8, %7 : vector<16x4xf32>
    %c1_i32 = arith.constant 1 : i32
    %10 = arith.cmpi eq, %arg1, %c1_i32 : i32
    %cst_11 = arith.constant 0.000000e+00 : f32
    %cst_12 = arith.constant 1.000000e+00 : f32
    %11 = arith.select %10, %cst_11, %cst_12 : f32
    %c0_13 = arith.constant 0 : index
    %c0_14 = arith.constant 0 : index
    %c0_15 = arith.constant 0 : index
    %c0_16 = arith.constant 0 : index
    %12 = vector.load %arg4[%c0_13, %c0_14, %c0_15, %c0_16] : memref<1x1x16x4xf32, #tpu.memory_space<vmem>>, vector<1x1x16x4xf32>
    %13 = vector.shape_cast %12 : vector<1x1x16x4xf32> to vector<16x4xf32>
    %14 = vector.broadcast %11 : f32 to vector<16x4xf32>
    %15 = arith.mulf %14, %13 : vector<16x4xf32>
    %c0_17 = arith.constant 0 : index
    %c1 = arith.constant 1 : index
    %c0_18 = arith.constant 0 : index
    %16 = vector.load %arg8[%c0_17, %c1, %c0_18] : memref<10x24x4xf32, #tpu.memory_space<vmem>>, vector<1x16x4xf32>
    %17 = vector.shape_cast %16 : vector<1x16x4xf32> to vector<16x4xf32>
    %18 = vector.shape_cast %9 : vector<16x4xf32> to vector<1x16x4xf32>
    tpu.vector_store %arg8[%c0_17, %c1, %c0_18], %18 {strides = array<i32>} : memref<10x24x4xf32, #tpu.memory_space<vmem>>, vector<1x16x4xf32>,
    %c9 = arith.constant 9 : index
    %c1_19 = arith.constant 1 : index
    %c0_20 = arith.constant 0 : index
    %19 = vector.load %arg8[%c9, %c1_19, %c0_20] : memref<10x24x4xf32, #tpu.memory_space<vmem>>, vector<1x16x4xf32>
    %20 = vector.shape_cast %19 : vector<1x16x4xf32> to vector<16x4xf32>
    %21 = vector.shape_cast %15 : vector<16x4xf32> to vector<1x16x4xf32>
    tpu.vector_store %arg8[%c9, %c1_19, %c0_20], %21 {strides = array<i32>} : memref<10x24x4xf32, #tpu.memory_space<vmem>>, vector<1x16x4xf32>,
    %c0_21 = arith.constant 0 : index
    %c0_22 = arith.constant 0 : index
    %c0_23 = arith.constant 0 : index
    %c0_24 = arith.constant 0 : index
    %22 = vector.load %arg3[%c0_21, %c0_22, %c0_23, %c0_24] : memref<1x8x16x4xf32, #tpu.memory_space<vmem>>, vector<1x8x16x4xf32>
    %23 = vector.shape_cast %22 : vector<1x8x16x4xf32> to vector<8x16x4xf32>
    %c1_25 = arith.constant 1 : index
    %c1_26 = arith.constant 1 : index
    %c0_27 = arith.constant 0 : index
    %24 = vector.load %arg8[%c1_25, %c1_26, %c0_27] : memref<10x24x4xf32, #tpu.memory_space<vmem>>, vector<8x16x4xf32>
    tpu.vector_store %arg8[%c1_25, %c1_26, %c0_27], %23 {strides = array<i32>} : memref<10x24x4xf32, #tpu.memory_space<vmem>>, vector<8x16x4xf32>,
    %c0_28 = arith.constant 0 : index
    %c0_29 = arith.constant 0 : index
    %25 = vector.load %arg6[%c0_28, %c0_29] : memref<1x8xf32, #tpu.memory_space<vmem>>, vector<1x8xf32>
    %26 = vector.shape_cast %25 : vector<1x8xf32> to vector<8xf32>
    %27 = vector.shape_cast %26 : vector<8xf32> to vector<1x1x8xf32>
    %c0_30 = arith.constant 0 : index
    %c0_31 = arith.constant 0 : index
    %c0_32 = arith.constant 0 : index
    %28 = vector.load %arg8[%c0_30, %c0_31, %c0_32] : memref<10x24x4xf32, #tpu.memory_space<vmem>>, vector<8x24x4xf32>
    %c1_33 = arith.constant 1 : index
    %c0_34 = arith.constant 0 : index
    %c0_35 = arith.constant 0 : index
    %29 = vector.load %arg8[%c1_33, %c0_34, %c0_35] : memref<10x24x4xf32, #tpu.memory_space<vmem>>, vector<8x24x4xf32>
    %30 = tpu.concatenate %28, %29 in 2 : vector<8x24x4xf32>, vector<8x24x4xf32> -> vector<8x24x8xf32>
    %31 = vector.shape_cast %30 : vector<8x24x8xf32> to vector<192x8xf32>
    %c0_36 = arith.constant 0 : index
    %c0_37 = arith.constant 0 : index
    %c0_38 = arith.constant 0 : index
    %32 = vector.load %arg5[%c0_36, %c0_37, %c0_38] : memref<2x8x16xf32, #tpu.memory_space<vmem>>, vector<1x8x16xf32>
    %33 = vector.shape_cast %32 : vector<1x8x16xf32> to vector<8x16xf32>
    %cst_39 = arith.constant dense<0.000000e+00> : vector<192x16xf32>
    %34 = tpu.matmul %31, %33, %cst_39 {dimension_numbers = #tpu.dot_dimension_numbers<[1], [0], [0], [1], [0, 0, 1, 1], [], []>} : vector<192x8xf32>, vector<8x16xf32>, vector<192x16xf32> -> vector<192x16xf32>
    %35 = vector.shape_cast %34 : vector<192x16xf32> to vector<8x24x16xf32>
    %36 = vector.extract_strided_slice %35 {offsets = [0, 0, 0], sizes = [8, 16, 4], strides = [1, 1, 1]} : vector<8x24x16xf32> to vector<8x16x4xf32>
    %37 = vector.extract_strided_slice %35 {offsets = [0, 1, 8], sizes = [8, 16, 4], strides = [1, 1, 1]} : vector<8x24x16xf32> to vector<8x16x4xf32>
    %38 = arith.addf %36, %37 : vector<8x16x4xf32>
    %39 = vector.extract_strided_slice %35 {offsets = [0, 1, 4], sizes = [8, 16, 4], strides = [1, 1, 1]} : vector<8x24x16xf32> to vector<8x16x4xf32>
    %40 = vector.extract_strided_slice %35 {offsets = [0, 2, 12], sizes = [8, 16, 4], strides = [1, 1, 1]} : vector<8x24x16xf32> to vector<8x16x4xf32>
    %41 = arith.addf %39, %40 : vector<8x16x4xf32>
    %42 = tpu.concatenate %38, %41 in 2 : vector<8x16x4xf32>, vector<8x16x4xf32> -> vector<8x16x8xf32>
    %43 = vector.broadcast %27 : vector<1x1x8xf32> to vector<8x16x8xf32>
    %44 = arith.addf %42, %43 : vector<8x16x8xf32>
    %c0_40 = arith.constant 0 : index
    %c0_41 = arith.constant 0 : index
    %c0_42 = arith.constant 0 : index
    %c0_43 = arith.constant 0 : index
    %c0_44 = arith.constant 0 : index
    %45 = vector.load %arg7[%c0_40, %c0_41, %c0_42, %c0_43, %c0_44] : memref<1x8x2x16x8xf32, #tpu.memory_space<vmem>>, vector<1x8x1x16x8xf32>
    %46 = vector.shape_cast %45 : vector<1x8x1x16x8xf32> to vector<8x16x8xf32>
    %47 = vector.shape_cast %44 : vector<8x16x8xf32> to vector<1x8x1x16x8xf32>
    tpu.vector_store %arg7[%c0_40, %c0_41, %c0_42, %c0_43, %c0_44], %47 {strides = array<i32>} : memref<1x8x2x16x8xf32, #tpu.memory_space<vmem>>, vector<1x8x1x16x8xf32>,
    %c1_45 = arith.constant 1 : index
    %c0_46 = arith.constant 0 : index
    %c0_47 = arith.constant 0 : index
    %48 = vector.load %arg8[%c1_45, %c0_46, %c0_47] : memref<10x24x4xf32, #tpu.memory_space<vmem>>, vector<8x24x4xf32>
    %c2 = arith.constant 2 : index
    %c0_48 = arith.constant 0 : index
    %c0_49 = arith.constant 0 : index
    %49 = vector.load %arg8[%c2, %c0_48, %c0_49] : memref<10x24x4xf32, #tpu.memory_space<vmem>>, vector<8x24x4xf32>
    %50 = tpu.concatenate %48, %49 in 2 : vector<8x24x4xf32>, vector<8x24x4xf32> -> vector<8x24x8xf32>
    %51 = vector.shape_cast %50 : vector<8x24x8xf32> to vector<192x8xf32>
    %c1_50 = arith.constant 1 : index
    %c0_51 = arith.constant 0 : index
    %c0_52 = arith.constant 0 : index
    %52 = vector.load %arg5[%c1_50, %c0_51, %c0_52] : memref<2x8x16xf32, #tpu.memory_space<vmem>>, vector<1x8x16xf32>
    %53 = vector.shape_cast %52 : vector<1x8x16xf32> to vector<8x16xf32>
    %cst_53 = arith.constant dense<0.000000e+00> : vector<192x16xf32>
    %54 = tpu.matmul %51, %53, %cst_53 {dimension_numbers = #tpu.dot_dimension_numbers<[1], [0], [0], [1], [0, 0, 1, 1], [], []>} : vector<192x8xf32>, vector<8x16xf32>, vector<192x16xf32> -> vector<192x16xf32>
    %55 = vector.shape_cast %54 : vector<192x16xf32> to vector<8x24x16xf32>
    %56 = vector.extract_strided_slice %55 {offsets = [0, 0, 0], sizes = [8, 16, 4], strides = [1, 1, 1]} : vector<8x24x16xf32> to vector<8x16x4xf32>
    %57 = vector.extract_strided_slice %55 {offsets = [0, 1, 8], sizes = [8, 16, 4], strides = [1, 1, 1]} : vector<8x24x16xf32> to vector<8x16x4xf32>
    %58 = arith.addf %56, %57 : vector<8x16x4xf32>
    %59 = vector.extract_strided_slice %55 {offsets = [0, 1, 4], sizes = [8, 16, 4], strides = [1, 1, 1]} : vector<8x24x16xf32> to vector<8x16x4xf32>
    %60 = vector.extract_strided_slice %55 {offsets = [0, 2, 12], sizes = [8, 16, 4], strides = [1, 1, 1]} : vector<8x24x16xf32> to vector<8x16x4xf32>
    %61 = arith.addf %59, %60 : vector<8x16x4xf32>
    %62 = tpu.concatenate %58, %61 in 2 : vector<8x16x4xf32>, vector<8x16x4xf32> -> vector<8x16x8xf32>
    %63 = vector.broadcast %27 : vector<1x1x8xf32> to vector<8x16x8xf32>
    %64 = arith.addf %62, %63 : vector<8x16x8xf32>
    %c0_54 = arith.constant 0 : index
    %c0_55 = arith.constant 0 : index
    %c1_56 = arith.constant 1 : index
    %c0_57 = arith.constant 0 : index
    %c0_58 = arith.constant 0 : index
    %65 = vector.load %arg7[%c0_54, %c0_55, %c1_56, %c0_57, %c0_58] : memref<1x8x2x16x8xf32, #tpu.memory_space<vmem>>, vector<1x8x1x16x8xf32>
    %66 = vector.shape_cast %65 : vector<1x8x1x16x8xf32> to vector<8x16x8xf32>
    %67 = vector.shape_cast %64 : vector<8x16x8xf32> to vector<1x8x1x16x8xf32>
    tpu.vector_store %arg7[%c0_54, %c0_55, %c1_56, %c0_57, %c0_58], %67 {strides = array<i32>} : memref<1x8x2x16x8xf32, #tpu.memory_space<vmem>>, vector<1x8x1x16x8xf32>,
    return
  }
  func.func @transform_0(%arg0: i32, %arg1: i32) -> (i32, i32, i32, i32) {
    %c8_i32 = arith.constant 8 : i32
    %0 = arith.muli %arg1, %c8_i32 : i32
    %c1_i32 = arith.constant 1 : i32
    %1 = arith.subi %0, %c1_i32 : i32
    %c0_i32 = arith.constant 0 : i32
    %2 = arith.maxsi %1, %c0_i32 : i32
    %c0_i32_0 = arith.constant 0 : i32
    %c0_i32_1 = arith.constant 0 : i32
    %c0_i32_2 = arith.constant 0 : i32
    return %arg0, %2, %c0_i32_0, %c0_i32_1 : i32, i32, i32, i32
  }
  func.func @transform_1(%arg0: i32, %arg1: i32) -> (i32, i32, i32, i32) {
    %c0_i32 = arith.constant 0 : i32
    %c0_i32_0 = arith.constant 0 : i32
    %c0_i32_1 = arith.constant 0 : i32
    return %arg0, %arg1, %c0_i32, %c0_i32_0 : i32, i32, i32, i32
  }
  func.func @transform_2(%arg0: i32, %arg1: i32) -> (i32, i32, i32, i32) {
    %c1_i32 = arith.constant 1 : i32
    %0 = arith.addi %arg1, %c1_i32 : i32
    %c8_i32 = arith.constant 8 : i32
    %1 = arith.muli %0, %c8_i32 : i32
    %c15_i32 = arith.constant 15 : i32
    %2 = arith.minsi %1, %c15_i32 : i32
    %c0_i32 = arith.constant 0 : i32
    %c0_i32_0 = arith.constant 0 : i32
    %c0_i32_1 = arith.constant 0 : i32
    return %arg0, %2, %c0_i32, %c0_i32_0 : i32, i32, i32, i32
  }
  func.func @transform_3(%arg0: i32, %arg1: i32) -> (i32, i32, i32) {
    %c0_i32 = arith.constant 0 : i32
    %c0_i32_0 = arith.constant 0 : i32
    %c0_i32_1 = arith.constant 0 : i32
    %c0_i32_2 = arith.constant 0 : i32
    return %c0_i32, %c0_i32_0, %c0_i32_1 : i32, i32, i32
  }
  func.func @transform_4(%arg0: i32, %arg1: i32) -> (i32, i32) {
    %c0_i32 = arith.constant 0 : i32
    %c0_i32_0 = arith.constant 0 : i32
    %c0_i32_1 = arith.constant 0 : i32
    return %c0_i32, %c0_i32_0 : i32, i32
  }
  func.func @transform_5(%arg0: i32, %arg1: i32) -> (i32, i32, i32, i32, i32) {
    %c0_i32 = arith.constant 0 : i32
    %c0_i32_0 = arith.constant 0 : i32
    %c0_i32_1 = arith.constant 0 : i32
    %c0_i32_2 = arith.constant 0 : i32
    return %arg0, %arg1, %c0_i32, %c0_i32_0, %c0_i32_1 : i32, i32, i32, i32, i32
  }
}

</mosaic_0001>

<llo_original>
// kernel: tpu_custom_call.1
$region0: #{tpu_custom_call.1}
  #allocation0 [shape = 'u32[]', space=smem, size = 0x4, offset = 0x4, fixed_abs, tag = 'smem constant byte address 0x4 - core index']
  #allocation1 [shape = 'u32[144,128]{1,0:T(1,128)}', space=vmem, size = 0x12000, scoped, tag = 'internal scratch']
  #allocation2 [shape = 'f32[10,24,4]{2,1,0:T(8,128)}', space=vmem, size = 0x1e000, scoped, tag = 'scratch operand']
  %s0 = inlined_call_operand.hbm [shape: f32[2,16,16,4], index: 0, kind: input, shape index: {}]
  %s1 = inlined_call_operand.hbm [shape: f32[2,16,16,4], index: 1, kind: input, shape index: {}]
  %s2 = inlined_call_operand.hbm [shape: f32[2,16,16,4], index: 2, kind: input, shape index: {}]
  %s3 = inlined_call_operand.hbm [shape: f32[2,8,16], index: 3, kind: input, shape index: {}]
  %s4 = inlined_call_operand.hbm [shape: f32[1,8], index: 4, kind: input, shape index: {}]
  %s5 = inlined_call_operand.hbm [shape: f32[2,16,2,16,8], index: 5, kind: output, shape index: {}]
  %s6 = sld [smem:[#allocation0]]
  $region73: #{tpu_custom_call.1} parent=0
    _
  %s8 = ssub.s32 1, %s6
  %s9 = scalar_select 0, %s8, %s6
  $region1: #{tpu_custom_call.1} parent=0
    #allocation3 [shape = 'u8[16384]{0}', space=vmem, size = 0x4000, scoped, tag = 'input window, operand 0']
    #allocation4 [shape = 's32[2]{0}', space=sflag, size = 0x8, scoped, tag = 'scoped memory for tpu_custom_call.1']
    #allocation5 [shape = 's32[2]{0}', space=sflag, size = 0x8, scoped, tag = 'scoped memory for tpu_custom_call.1']
    #allocation6 [shape = 'u8[131072]{0}', space=vmem, size = 0x20000, scoped, tag = 'input window, operand 1']
    #allocation7 [shape = 's32[2]{0}', space=sflag, size = 0x8, scoped, tag = 'scoped memory for tpu_custom_call.1']
    #allocation8 [shape = 'u8[16384]{0}', space=vmem, size = 0x4000, scoped, tag = 'input window, operand 2']
    #allocation9 [shape = 'u8[8192]{0}', space=vmem, size = 0x2000, scoped, tag = 'input window, operand 3, single buffered']
    #allocation10 [shape = 's32[1]{0}', space=sflag, size = 0x4, scoped, tag = 'scoped memory for tpu_custom_call.1']
    #allocation11 [shape = 'u8[512]{0}', space=vmem, size = 0x400, scoped, tag = 'input window, operand 4, single buffered']
    #allocation12 [shape = 'u8[262144]{0}', space=vmem, size = 0x40000, scoped, tag = 'output window, operand 0']
    %10 = vsyncpa [#allocation4], 0
    %s11 = scalar_lea.sflag [#allocation4], 1
    %12 = vsyncpa %s11, 0
    %13 = vsyncpa [#allocation7], 0
    %s14 = scalar_lea.sflag [#allocation7], 1
    %15 = vsyncpa %s14, 0
    %16 = vsyncpa [#allocation10], 0
    %17 = vsyncpa [#allocation5], 0
    %s18 = scalar_lea.sflag [#allocation5], 1
    %19 = vsyncpa %s18, 0
    loop: start=0, step=1, limit=6
    $region2: #{tpu_custom_call.1} parent=1 // loop_pre_header
      _
    $region3: #{tpu_custom_call.1} parent=1 // loop_header
      %s21 = sphi 0, %s25
      %p22 = scmp.ge.s32.totalorder %s21, 6
      %s28 = sphi 0, %s40
      %s29 = sphi 0, %s36
      %s30 = sphi 0, %s28
      %s31 = sphi 0, %s29
      %s32 = sphi 0, %s30
      %s33 = sphi 0, %s31
      %s53 = sphi 0, %s55
      %s56 = sphi 0, %s53
      %s57 = sphi 0, %s56
      %s73 = sphi 0, %s57
      %s81 = sphi 0, %s83
      %s84 = sphi 0, %s81
      %s85 = sphi 0, %s84
      %s101 = sphi 0, %s85
      %s117 = sphi 0, %s119
      %s120 = sphi 0, %s117
      %s121 = sphi 0, %s120
      %s137 = sphi 0, %s121
      %s141 = sphi 0, %s141
      %s143 = sphi 0, %s141
      %s144 = sphi 0, %s143
      %s158 = sphi 0, %s144
      %s162 = sphi 0, %s162
      %s164 = sphi 0, %s162
      %s165 = sphi 0, %s164
      %s179 = sphi 0, %s165
      %s187 = sphi 0, %s189
      %s190 = sphi 0, %s187
      %s191 = sphi 0, %s190
      %s207 = sphi 0, %s191
    $region4: #{tpu_custom_call.1} parent=1 // loop_header_branch
      %24 = sbr.rel (%p22) target = $region8
    $region5: #{tpu_custom_call.1} parent=1 // loop_body
      %s26 = ssub.s32 %s21, 1
      %s27 = ssub.s32 %s21, 2
      %s34 = sadd.s32 1, %s29
      %p35 = scmp.ge.s32.totalorder %s34, 2
      %s36 = scalar_select %p35, 0, %s34
      %s37 = sadd.s32 1, %s28
      %s38 = scalar_select %p35, %s37, %s28
      %p39 = scmp.ge.s32.totalorder %s38, 2
      %s40 = scalar_select %p39, 0, %s38
      %s41 = smul.u32 %s29, 8
      %s42 = ssub.s32 %s41, 1
      %p43 = scmp.gt.s32.totalorder %s42, 0
      %s44 = scalar_select %p43, %s42, 0
      %s45 = smul.u32 %s36, 8
      %s46 = ssub.s32 %s45, 1
      %p47 = scmp.gt.s32.totalorder %s46, 0
      %s48 = scalar_select %p47, %s46, 0
      %s49 = ssub.s32 %s28, %s40
      %s50 = ssub.s32 %s44, %s48
      %s51 = sor.u32 %s49, %s50
      %p52 = scmp.eq.s32.totalorder %s51, 0
      %s54 = sadd.s32 %s53, 1
      %s55 = scalar_select %p52, %s53, %s54
      %p58 = pneg %p52
      %p59 = scmp.eq.s32.totalorder %s21, 3
      %p60 = por %p58, %p59
      %p61 = scmp.ne.s32.totalorder %s53, %s56
      %p62 = scmp.eq.s32.totalorder %s21, 0
      %p63 = por %p61, %p62
      %p64 = scmp.ne.s32.totalorder %s53, %s56
      %p65 = scmp.eq.s32.totalorder %s26, 3
      %p66 = por %p64, %p65
      %p67 = scmp.ne.s32.totalorder %s56, %s57
      %p68 = scmp.eq.s32.totalorder %s26, 0
      %p69 = por %p67, %p68
      %p70 = scmp.ne.s32.totalorder %s56, %s57
      %p71 = scmp.eq.s32.totalorder %s27, 3
      %p72 = por %p70, %p71
      %p74 = scmp.ne.s32.totalorder %s57, %s73
      %p75 = scmp.eq.s32.totalorder %s27, 0
      %p76 = por %p74, %p75
      %s77 = ssub.s32 %s28, %s40
      %s78 = ssub.s32 %s29, %s36
      %s79 = sor.u32 %s77, %s78
      %p80 = scmp.eq.s32.totalorder %s79, 0
      %s82 = sadd.s32 %s81, 1
      %s83 = scalar_select %p80, %s81, %s82
      %p86 = pneg %p80
      %p87 = scmp.eq.s32.totalorder %s21, 3
      %p88 = por %p86, %p87
      %p89 = scmp.ne.s32.totalorder %s81, %s84
      %p90 = scmp.eq.s32.totalorder %s21, 0
      %p91 = por %p89, %p90
      %p92 = scmp.ne.s32.totalorder %s81, %s84
      %p93 = scmp.eq.s32.totalorder %s26, 3
      %p94 = por %p92, %p93
      %p95 = scmp.ne.s32.totalorder %s84, %s85
      %p96 = scmp.eq.s32.totalorder %s26, 0
      %p97 = por %p95, %p96
      %p98 = scmp.ne.s32.totalorder %s84, %s85
      %p99 = scmp.eq.s32.totalorder %s27, 3
      %p100 = por %p98, %p99
      %p102 = scmp.ne.s32.totalorder %s85, %s101
      %p103 = scmp.eq.s32.totalorder %s27, 0
      %p104 = por %p102, %p103
      %s105 = sadd.s32 %s29, 1
      %s106 = smul.u32 %s105, 8
      %p107 = scmp.lt.s32.totalorder %s106, 15
      %s108 = scalar_select %p107, %s106, 15
      %s109 = sadd.s32 %s36, 1
      %s110 = smul.u32 %s109, 8
      %p111 = scmp.lt.s32.totalorder %s110, 15
      %s112 = scalar_select %p111, %s110, 15
      %s113 = ssub.s32 %s28, %s40
      %s114 = ssub.s32 %s108, %s112
      %s115 = sor.u32 %s113, %s114
      %p116 = scmp.eq.s32.totalorder %s115, 0
      %s118 = sadd.s32 %s117, 1
      %s119 = scalar_select %p116, %s117, %s118
      %p122 = pneg %p116
      %p123 = scmp.eq.s32.totalorder %s21, 3
      %p124 = por %p122, %p123
      %p125 = scmp.ne.s32.totalorder %s117, %s120
      %p126 = scmp.eq.s32.totalorder %s21, 0
      %p127 = por %p125, %p126
      %p128 = scmp.ne.s32.totalorder %s117, %s120
      %p129 = scmp.eq.s32.totalorder %s26, 3
      %p130 = por %p128, %p129
      %p131 = scmp.ne.s32.totalorder %s120, %s121
      %p132 = scmp.eq.s32.totalorder %s26, 0
      %p133 = por %p131, %p132
      %p134 = scmp.ne.s32.totalorder %s120, %s121
      %p135 = scmp.eq.s32.totalorder %s27, 3
      %p136 = por %p134, %p135
      %p138 = scmp.ne.s32.totalorder %s121, %s137
      %p139 = scmp.eq.s32.totalorder %s27, 0
      %p140 = por %p138, %p139
      %s142 = sadd.s32 %s141, 1
      %p145 = scmp.eq.s32.totalorder %s21, 3
      %p146 = scmp.ne.s32.totalorder %s141, %s143
      %p147 = scmp.eq.s32.totalorder %s21, 0
      %p148 = por %p146, %p147
      %p149 = scmp.ne.s32.totalorder %s141, %s143
      %p150 = scmp.eq.s32.totalorder %s26, 3
      %p151 = por %p149, %p150
      %p152 = scmp.ne.s32.totalorder %s143, %s144
      %p153 = scmp.eq.s32.totalorder %s26, 0
      %p154 = por %p152, %p153
      %p155 = scmp.ne.s32.totalorder %s143, %s144
      %p156 = scmp.eq.s32.totalorder %s27, 3
      %p157 = por %p155, %p156
      %p159 = scmp.ne.s32.totalorder %s144, %s158
      %p160 = scmp.eq.s32.totalorder %s27, 0
      %p161 = por %p159, %p160
      %s163 = sadd.s32 %s162, 1
      %p166 = scmp.eq.s32.totalorder %s21, 3
      %p167 = scmp.ne.s32.totalorder %s162, %s164
      %p168 = scmp.eq.s32.totalorder %s21, 0
      %p169 = por %p167, %p168
      %p170 = scmp.ne.s32.totalorder %s162, %s164
      %p171 = scmp.eq.s32.totalorder %s26, 3
      %p172 = por %p170, %p171
      %p173 = scmp.ne.s32.totalorder %s164, %s165
      %p174 = scmp.eq.s32.totalorder %s26, 0
      %p175 = por %p173, %p174
      %p176 = scmp.ne.s32.totalorder %s164, %s165
      %p177 = scmp.eq.s32.totalorder %s27, 3
      %p178 = por %p176, %p177
      %p180 = scmp.ne.s32.totalorder %s165, %s179
      %p181 = scmp.eq.s32.totalorder %s27, 0
      %p182 = por %p180, %p181
      %s183 = ssub.s32 %s28, %s40
      %s184 = ssub.s32 %s29, %s36
      %s185 = sor.u32 %s183, %s184
      %p186 = scmp.eq.s32.totalorder %s185, 0
      %s188 = sadd.s32 %s187, 1
      %s189 = scalar_select %p186, %s187, %s188
      %p192 = pneg %p186
      %p193 = scmp.eq.s32.totalorder %s21, 3
      %p194 = por %p192, %p193
      %p195 = scmp.ne.s32.totalorder %s187, %s190
      %p196 = scmp.eq.s32.totalorder %s21, 0
      %p197 = por %p195, %p196
      %p198 = scmp.ne.s32.totalorder %s187, %s190
      %p199 = scmp.eq.s32.totalorder %s26, 3
      %p200 = por %p198, %p199
      %p201 = scmp.ne.s32.totalorder %s190, %s191
      %p202 = scmp.eq.s32.totalorder %s26, 0
      %p203 = por %p201, %p202
      %p204 = scmp.ne.s32.totalorder %s190, %s191
      %p205 = scmp.eq.s32.totalorder %s27, 3
      %p206 = por %p204, %p205
      %p208 = scmp.ne.s32.totalorder %s191, %s207
      %p209 = scmp.eq.s32.totalorder %s27, 0
      %p210 = por %p208, %p209
      %p211 = scmp.le.s32.totalorder 1, %s21
      %p212 = scmp.lt.s32.totalorder %s21, 5
      %p213 = pnand %p211, %p212
      %p214 = pneg %p213
      // Predicated region
      $region9: #{tpu_custom_call.1} parent=5 // pred_check
        _
      $region10: #{tpu_custom_call.1} parent=5 // pred_check_branch
        %216 = sbr.rel (%p213) target = $region12
      $region11: #{tpu_custom_call.1} parent=5 // pred_region
        %s217 = ssub.s32 %s21, 1
        // Predicated region
        $region13: #{tpu_custom_call.1} parent=11 // pred_check
          %p218 = pneg %p154
        $region14: #{tpu_custom_call.1} parent=11 // pred_check_branch
          %220 = sbr.rel (%p218) target = $region16
        $region15: #{tpu_custom_call.1} parent=11 // pred_region
          %s222 = ssub.s32 256, 256
          %223 = vsyncadd [#allocation10], %s222
          %s224 = sshll.u32 [#allocation9], 4
          %s225 = int_to_ptr.vmem [resolvable:$true] %s224
          %230 = dma.hbm_to_vmem [thread:$0]  %s3, 256, %s225, [#allocation10], 128, 128, 8
        $region16: #{tpu_custom_call.1} parent=11 // pred_fallthru
          _
        // Predicated region
        $region17: #{tpu_custom_call.1} parent=11 // pred_check
          %p231 = pneg %p175
        $region18: #{tpu_custom_call.1} parent=11 // pred_check_branch
          %233 = sbr.rel (%p231) target = $region20
        $region19: #{tpu_custom_call.1} parent=11 // pred_region
          %s235 = ssub.s32 16, 16
          %236 = vsyncadd [#allocation10], %s235
          %s238 = sshll.u32 [#allocation11], 4
          %s239 = int_to_ptr.vmem [resolvable:$true] %s238
          %241 = dma.hbm_to_vmem [thread:$0]  %s4, 16, %s239, [#allocation10]
        $region20: #{tpu_custom_call.1} parent=11 // pred_fallthru
          _
      $region12: #{tpu_custom_call.1} parent=5 // pred_fallthru
        _
      %p242 = scmp.lt.s32.totalorder %s21, 4
      // Predicated region
      $region21: #{tpu_custom_call.1} parent=5 // pred_check
        %p243 = pneg %p242
      $region22: #{tpu_custom_call.1} parent=5 // pred_check_branch
        %245 = sbr.rel (%p243) target = $region24
      $region23: #{tpu_custom_call.1} parent=5 // pred_region
        // Predicated region
        $region25: #{tpu_custom_call.1} parent=23 // pred_check
          %p246 = pneg %p63
        $region26: #{tpu_custom_call.1} parent=23 // pred_check_branch
          %248 = sbr.rel (%p246) target = $region28
        $region27: #{tpu_custom_call.1} parent=23 // pred_region
          %s249 = sand.u32 %s53, 1
          %s250 = scalar_lea.sflag [#allocation4], %s249
          %s251 = sand.u32 %s53, 1
          %s252 = smul.addr %s251, 16
          %s253 = scalar_lea.vmem [#allocation3], %s252
          %s254 = smul.u32 %s29, 8
          %s255 = ssub.s32 %s254, 1
          %p256 = scmp.gt.s32.totalorder %s255, 0
          %s257 = scalar_select %p256, %s255, 0
          %s259 = ssub.s32 256, 256
          %260 = vsyncadd %s250, %s259
          %s261 = smul.addr %s257, 2
          %s262 = smul.addr %s28, 32
          %s263 = sadd.s32 %s261, %s262
          %s264 = smul.addr %s263, 128
          %s265 = scalar_lea.hbm %s0, %s264
          %s266 = sshll.u32 %s253, 4
          %s267 = int_to_ptr.vmem [resolvable:$true] %s266
          %272 = dma.hbm_to_vmem [thread:$0]  %s265, 256, %s267, %s250, 128, 128, 8
        $region28: #{tpu_custom_call.1} parent=23 // pred_fallthru
          _
        // Predicated region
        $region29: #{tpu_custom_call.1} parent=23 // pred_check
          %p273 = pneg %p91
        $region30: #{tpu_custom_call.1} parent=23 // pred_check_branch
          %275 = sbr.rel (%p273) target = $region32
        $region31: #{tpu_custom_call.1} parent=23 // pred_region
          %s276 = sand.u32 %s21, 1
          %s277 = scalar_lea.sflag [#allocation7], %s276
          %s278 = sand.u32 %s81, 1
          %s279 = smul.addr %s278, 128
          %s280 = scalar_lea.vmem [#allocation6], %s279
          %s281 = smul.u32 8, %s29
          %s283 = ssub.s32 2048, 2048
          %284 = vsyncadd %s277, %s283
          %s285 = smul.addr %s281, 2
          %s286 = smul.addr %s28, 32
          %s287 = sadd.s32 %s285, %s286
          %s288 = smul.addr %s287, 128
          %s289 = scalar_lea.hbm %s1, %s288
          %s290 = sshll.u32 %s280, 4
          %s291 = int_to_ptr.vmem [resolvable:$true] %s290
          %296 = dma.hbm_to_vmem [thread:$0]  %s289, 2048, %s291, %s277, 128, 128, 8
        $region32: #{tpu_custom_call.1} parent=23 // pred_fallthru
          _
        // Predicated region
        $region33: #{tpu_custom_call.1} parent=23 // pred_check
          %p297 = pneg %p127
        $region34: #{tpu_custom_call.1} parent=23 // pred_check_branch
          %299 = sbr.rel (%p297) target = $region36
        $region35: #{tpu_custom_call.1} parent=23 // pred_region
          %s300 = sand.u32 %s21, 1
          %s301 = scalar_lea.sflag [#allocation7], %s300
          %s302 = sand.u32 %s117, 1
          %s303 = smul.addr %s302, 16
          %s304 = scalar_lea.vmem [#allocation8], %s303
          %s305 = sadd.s32 %s29, 1
          %s306 = smul.u32 %s305, 8
          %p307 = scmp.lt.s32.totalorder %s306, 15
          %s308 = scalar_select %p307, %s306, 15
          %s310 = ssub.s32 256, 256
          %311 = vsyncadd %s301, %s310
          %s312 = smul.addr %s308, 2
          %s313 = smul.addr %s28, 32
          %s314 = sadd.s32 %s312, %s313
          %s315 = smul.addr %s314, 128
          %s316 = scalar_lea.hbm %s2, %s315
          %s317 = sshll.u32 %s304, 4
          %s318 = int_to_ptr.vmem [resolvable:$true] %s317
          %323 = dma.hbm_to_vmem [thread:$0]  %s316, 256, %s318, %s301, 128, 128, 8
        $region36: #{tpu_custom_call.1} parent=23 // pred_fallthru
          _
      $region24: #{tpu_custom_call.1} parent=5 // pred_fallthru
        _
      %p324 = scmp.le.s32.totalorder 1, %s21
      %p325 = scmp.lt.s32.totalorder %s21, 5
      %p326 = pnand %p324, %p325
      %p327 = pneg %p326
      // Predicated region
      $region37: #{tpu_custom_call.1} parent=5 // pred_check
        _
      $region38: #{tpu_custom_call.1} parent=5 // pred_check_branch
        %329 = sbr.rel (%p326) target = $region40
      $region39: #{tpu_custom_call.1} parent=5 // pred_region
        %s330 = ssub.s32 %s21, 1
        %s331 = sand.u32 %s56, 1
        %s332 = scalar_lea.sflag [#allocation4], %s331
        %s333 = sand.u32 %s56, 1
        %s334 = smul.addr %s333, 16
        %s335 = scalar_lea.vmem [#allocation3], %s334
        // Predicated region
        $region41: #{tpu_custom_call.1} parent=39 // pred_check
          %p336 = pneg %p69
        $region42: #{tpu_custom_call.1} parent=39 // pred_check_branch
          %338 = sbr.rel (%p336) target = $region44
        $region43: #{tpu_custom_call.1} parent=39 // pred_region
          %339 = dma.done %s332, 256
        $region44: #{tpu_custom_call.1} parent=39 // pred_fallthru
          _
        %s340 = sand.u32 %s26, 1
        %s341 = scalar_lea.sflag [#allocation7], %s340
        %s342 = sand.u32 %s84, 1
        %s343 = smul.addr %s342, 128
        %s344 = scalar_lea.vmem [#allocation6], %s343
        // Predicated region
        $region45: #{tpu_custom_call.1} parent=39 // pred_check
          %p345 = pneg %p97
        $region46: #{tpu_custom_call.1} parent=39 // pred_check_branch
          %347 = sbr.rel (%p345) target = $region48
        $region47: #{tpu_custom_call.1} parent=39 // pred_region
          %348 = dma.done %s341, 2048
        $region48: #{tpu_custom_call.1} parent=39 // pred_fallthru
          _
        %s349 = sand.u32 %s26, 1
        %s350 = scalar_lea.sflag [#allocation7], %s349
        %s351 = sand.u32 %s120, 1
        %s352 = smul.addr %s351, 16
        %s353 = scalar_lea.vmem [#allocation8], %s352
        // Predicated region
        $region49: #{tpu_custom_call.1} parent=39 // pred_check
          %p354 = pneg %p133
        $region50: #{tpu_custom_call.1} parent=39 // pred_check_branch
          %356 = sbr.rel (%p354) target = $region52
        $region51: #{tpu_custom_call.1} parent=39 // pred_region
          %357 = dma.done %s350, 256
        $region52: #{tpu_custom_call.1} parent=39 // pred_fallthru
          _
        // Predicated region
        $region53: #{tpu_custom_call.1} parent=39 // pred_check
          %p358 = pneg %p154
        $region54: #{tpu_custom_call.1} parent=39 // pred_check_branch
          %360 = sbr.rel (%p358) target = $region56
        $region55: #{tpu_custom_call.1} parent=39 // pred_region
          %361 = dma.done [#allocation10], 256
        $region56: #{tpu_custom_call.1} parent=39 // pred_fallthru
          _
        // Predicated region
        $region57: #{tpu_custom_call.1} parent=39 // pred_check
          %p362 = pneg %p175
        $region58: #{tpu_custom_call.1} parent=39 // pred_check_branch
          %364 = sbr.rel (%p362) target = $region60
        $region59: #{tpu_custom_call.1} parent=39 // pred_region
          %365 = dma.done [#allocation10], 16
        $region60: #{tpu_custom_call.1} parent=39 // pred_fallthru
          _
        %s366 = sand.u32 %s56, 1
        %s367 = scalar_lea.sflag [#allocation4], %s366
        %s368 = sand.u32 %s56, 1
        %s369 = smul.addr %s368, 16
        %s370 = scalar_lea.vmem [#allocation3], %s369
        %p371 = pneg %p69
        %p372 = pneg %p66
        %s373 = sand.u32 %s26, 1
        %s374 = scalar_lea.sflag [#allocation7], %s373
        %s375 = sand.u32 %s84, 1
        %s376 = smul.addr %s375, 128
        %s377 = scalar_lea.vmem [#allocation6], %s376
        %p378 = pneg %p97
        %p379 = pneg %p94
        %s380 = sand.u32 %s26, 1
        %s381 = scalar_lea.sflag [#allocation7], %s380
        %s382 = sand.u32 %s120, 1
        %s383 = smul.addr %s382, 16
        %s384 = scalar_lea.vmem [#allocation8], %s383
        %p385 = pneg %p133
        %p386 = pneg %p130
        %p387 = pneg %p154
        %p388 = pneg %p151
        %p389 = pneg %p175
        %p390 = pneg %p172
        %p391 = pneg %p203
        %p392 = pneg %p200
        %s393 = sand.u32 %s190, 1
        %s394 = scalar_lea.sflag [#allocation5], %s393
        %s395 = sand.u32 %s190, 1
        %s396 = smul.addr %s395, 256
        %s397 = scalar_lea.vmem [#allocation12], %s396
        %s398 = smul.u32 %s31, 8
        %s399 = ssub.s32 %s398, 1
        %p400 = scmp.gt.s32.totalorder %s399, 0
        %s401 = scalar_select %p400, %s399, 0
        %s402 = smul.u32 8, %s31
        %s403 = sadd.s32 %s31, 1
        %s404 = smul.u32 %s403, 8
        %p405 = scmp.lt.s32.totalorder %s404, 15
        %s406 = scalar_select %p405, %s404, 15
        %s407 = smul.u32 8, %s31
        %vm408 = vcmask 24576
        %409 = vst.msk [vmem:[#allocation2] sm:$0x1] %vm408, 0.0
        %410 = vst.msk [vmem:[#allocation2 + $0x18] sm:$0x1] %vm408, 0.0
        %411 = vst.msk [vmem:[#allocation2 + $0x30] sm:$0x1] %vm408, 0.0
        %412 = vst.msk [vmem:[#allocation2 + $0x48] sm:$0x1] %vm408, 0.0
        %413 = vst.msk [vmem:[#allocation2 + $0x60] sm:$0x1] %vm408, 0.0
        %414 = vst.msk [vmem:[#allocation2 + $0x78] sm:$0x1] %vm408, 0.0
        %415 = vst.msk [vmem:[#allocation2 + $0x90] sm:$0x1] %vm408, 0.0
        %416 = vst.msk [vmem:[#allocation2 + $0xa8] sm:$0x1] %vm408, 0.0
        %417 = vst.msk [vmem:[#allocation2 + $0xc0] sm:$0x1] %vm408, 0.0
        %418 = vst.msk [vmem:[#allocation2 + $0xd8] sm:$0x1] %vm408, 0.0
        %vm419 = vcmask 30720
        %420 = vst.msk [vmem:[#allocation2 + $0x11] sm:$0x7f] %vm419, 0.0
        %421 = vst.msk [vmem:[#allocation2 + $0x29] sm:$0x7f] %vm419, 0.0
        %422 = vst.msk [vmem:[#allocation2 + $0x41] sm:$0x7f] %vm419, 0.0
        %423 = vst.msk [vmem:[#allocation2 + $0x59] sm:$0x7f] %vm419, 0.0
        %424 = vst.msk [vmem:[#allocation2 + $0x71] sm:$0x7f] %vm419, 0.0
        %425 = vst.msk [vmem:[#allocation2 + $0x89] sm:$0x7f] %vm419, 0.0
        %426 = vst.msk [vmem:[#allocation2 + $0xa1] sm:$0x7f] %vm419, 0.0
        %427 = vst.msk [vmem:[#allocation2 + $0xb9] sm:$0x7f] %vm419, 0.0
        %428 = vst.msk [vmem:[#allocation2 + $0xd1] sm:$0x7f] %vm419, 0.0
        %429 = vst.msk [vmem:[#allocation2 + $0xe9] sm:$0x7f] %vm419, 0.0
        %p430 = scmp.eq.s32.totalorder %s31, 0
        %s431 = scalar_select %p430, 0.0, 1.0
        %v432 = vld [vmem:[%s335] sm:$0xff]
        %v433 = vld [vmem:[%s335 + $0x8] sm:$0xff]
        %v434 = vstv %s431
        %v435 = vmul.f32 %v434, %v432
        %v436 = vmul.f32 %v434, %v433
        %p437 = scmp.eq.s32.totalorder %s31, 1
        %s438 = scalar_select %p437, 0.0, 1.0
        %v439 = vld [vmem:[%s353] sm:$0xff]
        %v440 = vld [vmem:[%s353 + $0x8] sm:$0xff]
        %v441 = vstv %s438
        %v442 = vmul.f32 %v441, %v439
        %v443 = vmul.f32 %v441, %v440
        %vm444 = vcmask 31744
        %445 = vst.msk [vmem:[#allocation2 + $0x1] sm:$0xff] %vm444, %v435
        %446 = vst.msk [vmem:[#allocation2 + $0x9] sm:$0xff] %vm444, %v436
        %s447 = scalar_lea.vmem [#allocation2], 216
        %448 = vst.msk [vmem:[%s447 + $0x1] sm:$0xff] %vm444, %v442
        %449 = vst.msk [vmem:[%s447 + $0x9] sm:$0xff] %vm444, %v443
        %v450 = vld [vmem:[%s344] sm:$0xff]
        %v451 = vld [vmem:[%s344 + $0x8] sm:$0xff]
        %v452 = vld [vmem:[%s344 + $0x10] sm:$0xff]
        %v453 = vld [vmem:[%s344 + $0x18] sm:$0xff]
        %v454 = vld [vmem:[%s344 + $0x20] sm:$0xff]
        %v455 = vld [vmem:[%s344 + $0x28] sm:$0xff]
        %v456 = vld [vmem:[%s344 + $0x30] sm:$0xff]
        %v457 = vld [vmem:[%s344 + $0x38] sm:$0xff]
        %v458 = vld [vmem:[%s344 + $0x40] sm:$0xff]
        %v459 = vld [vmem:[%s344 + $0x48] sm:$0xff]
        %v460 = vld [vmem:[%s344 + $0x50] sm:$0xff]
        %v461 = vld [vmem:[%s344 + $0x58] sm:$0xff]
        %v462 = vld [vmem:[%s344 + $0x60] sm:$0xff]
        %v463 = vld [vmem:[%s344 + $0x68] sm:$0xff]
        %v464 = vld [vmem:[%s344 + $0x70] sm:$0xff]
        %v465 = vld [vmem:[%s344 + $0x78] sm:$0xff]
        %s466 = scalar_lea.vmem [#allocation2], 24
        %467 = vst.msk [vmem:[%s466 + $0x1] sm:$0xff] %vm444, %v450
        %468 = vst.msk [vmem:[%s466 + $0x9] sm:$0xff] %vm444, %v451
        %469 = vst.msk [vmem:[%s466 + $0x19] sm:$0xff] %vm444, %v452
        %470 = vst.msk [vmem:[%s466 + $0x21] sm:$0xff] %vm444, %v453
        %471 = vst.msk [vmem:[%s466 + $0x31] sm:$0xff] %vm444, %v454
        %472 = vst.msk [vmem:[%s466 + $0x39] sm:$0xff] %vm444, %v455
        %473 = vst.msk [vmem:[%s466 + $0x49] sm:$0xff] %vm444, %v456
        %474 = vst.msk [vmem:[%s466 + $0x51] sm:$0xff] %vm444, %v457
        %475 = vst.msk [vmem:[%s466 + $0x61] sm:$0xff] %vm444, %v458
        %476 = vst.msk [vmem:[%s466 + $0x69] sm:$0xff] %vm444, %v459
        %477 = vst.msk [vmem:[%s466 + $0x79] sm:$0xff] %vm444, %v460
        %478 = vst.msk [vmem:[%s466 + $0x81] sm:$0xff] %vm444, %v461
        %479 = vst.msk [vmem:[%s466 + $0x91] sm:$0xff] %vm444, %v462
        %480 = vst.msk [vmem:[%s466 + $0x99] sm:$0xff] %vm444, %v463
        %481 = vst.msk [vmem:[%s466 + $0xa9] sm:$0xff] %vm444, %v464
        %482 = vst.msk [vmem:[%s466 + $0xb1] sm:$0xff] %vm444, %v465
        %v483 = vld [vmem:[#allocation11] sm:$0x1]
        %v484 = vld [vmem:[#allocation2] sm:$0xff]
        %v485 = vld [vmem:[#allocation2 + $0x8] sm:$0xff]
        %v486 = vld [vmem:[#allocation2 + $0x10] sm:$0xff]
        %v487 = vld [vmem:[#allocation2 + $0x18] sm:$0xff]
        %v488 = vld [vmem:[#allocation2 + $0x20] sm:$0xff]
        %v489 = vld [vmem:[#allocation2 + $0x28] sm:$0xff]
        %v490 = vld [vmem:[#allocation2 + $0x30] sm:$0xff]
        %v491 = vld [vmem:[#allocation2 + $0x38] sm:$0xff]
        %v492 = vld [vmem:[#allocation2 + $0x40] sm:$0xff]
        %v493 = vld [vmem:[#allocation2 + $0x48] sm:$0xff]
        %v494 = vld [vmem:[#allocation2 + $0x50] sm:$0xff]
        %v495 = vld [vmem:[#allocation2 + $0x58] sm:$0xff]
        %v496 = vld [vmem:[#allocation2 + $0x60] sm:$0xff]
        %v497 = vld [vmem:[#allocation2 + $0x68] sm:$0xff]
        %v498 = vld [vmem:[#allocation2 + $0x70] sm:$0xff]
        %v499 = vld [vmem:[#allocation2 + $0x78] sm:$0xff]
        %v500 = vld [vmem:[#allocation2 + $0x80] sm:$0xff]
        %v501 = vld [vmem:[#allocation2 + $0x88] sm:$0xff]
        %v502 = vld [vmem:[#allocation2 + $0x90] sm:$0xff]
        %v503 = vld [vmem:[#allocation2 + $0x98] sm:$0xff]
        %v504 = vld [vmem:[#allocation2 + $0xa0] sm:$0xff]
        %v505 = vld [vmem:[#allocation2 + $0xa8] sm:$0xff]
        %v506 = vld [vmem:[#allocation2 + $0xb0] sm:$0xff]
        %v507 = vld [vmem:[#allocation2 + $0xb8] sm:$0xff]
        %v508 = vld [vmem:[%s466] sm:$0xff]
        %v509 = vld [vmem:[%s466 + $0x8] sm:$0xff]
        %v510 = vld [vmem:[%s466 + $0x10] sm:$0xff]
        %v511 = vld [vmem:[%s466 + $0x18] sm:$0xff]
        %v512 = vld [vmem:[%s466 + $0x20] sm:$0xff]
        %v513 = vld [vmem:[%s466 + $0x28] sm:$0xff]
        %v514 = vld [vmem:[%s466 + $0x30] sm:$0xff]
        %v515 = vld [vmem:[%s466 + $0x38] sm:$0xff]
        %v516 = vld [vmem:[%s466 + $0x40] sm:$0xff]
        %v517 = vld [vmem:[%s466 + $0x48] sm:$0xff]
        %v518 = vld [vmem:[%s466 + $0x50] sm:$0xff]
        %v519 = vld [vmem:[%s466 + $0x58] sm:$0xff]
        %v520 = vld [vmem:[%s466 + $0x60] sm:$0xff]
        %v521 = vld [vmem:[%s466 + $0x68] sm:$0xff]
        %v522 = vld [vmem:[%s466 + $0x70] sm:$0xff]
        %v523 = vld [vmem:[%s466 + $0x78] sm:$0xff]
        %v524 = vld [vmem:[%s466 + $0x80] sm:$0xff]
        %v525 = vld [vmem:[%s466 + $0x88] sm:$0xff]
        %v526 = vld [vmem:[%s466 + $0x90] sm:$0xff]
        %v527 = vld [vmem:[%s466 + $0x98] sm:$0xff]
        %v528 = vld [vmem:[%s466 + $0xa0] sm:$0xff]
        %v529 = vld [vmem:[%s466 + $0xa8] sm:$0xff]
        %v530 = vld [vmem:[%s466 + $0xb0] sm:$0xff]
        %v531 = vld [vmem:[%s466 + $0xb8] sm:$0xff]
        %556 = vrot.lane.b32.xlu0 %v508, 4
        %v557 = vpop.permute.xlu0 %556
        %558 = vrot.lane.b32.xlu0 %v509, 4
        %v559 = vpop.permute.xlu0 %558
        %560 = vrot.lane.b32.xlu0 %v510, 4
        %v561 = vpop.permute.xlu0 %560
        %562 = vrot.lane.b32.xlu0 %v511, 4
        %v563 = vpop.permute.xlu0 %562
        %564 = vrot.lane.b32.xlu0 %v512, 4
        %v565 = vpop.permute.xlu0 %564
        %566 = vrot.lane.b32.xlu0 %v513, 4
        %v567 = vpop.permute.xlu0 %566
        %568 = vrot.lane.b32.xlu0 %v514, 4
        %v569 = vpop.permute.xlu0 %568
        %570 = vrot.lane.b32.xlu0 %v515, 4
        %v571 = vpop.permute.xlu0 %570
        %572 = vrot.lane.b32.xlu0 %v516, 4
        %v573 = vpop.permute.xlu0 %572
        %574 = vrot.lane.b32.xlu0 %v517, 4
        %v575 = vpop.permute.xlu0 %574
        %576 = vrot.lane.b32.xlu0 %v518, 4
        %v577 = vpop.permute.xlu0 %576
        %578 = vrot.lane.b32.xlu0 %v519, 4
        %v579 = vpop.permute.xlu0 %578
        %580 = vrot.lane.b32.xlu0 %v520, 4
        %v581 = vpop.permute.xlu0 %580
        %582 = vrot.lane.b32.xlu0 %v521, 4
        %v583 = vpop.permute.xlu0 %582
        %584 = vrot.lane.b32.xlu0 %v522, 4
        %v585 = vpop.permute.xlu0 %584
        %586 = vrot.lane.b32.xlu0 %v523, 4
        %v587 = vpop.permute.xlu0 %586
        %588 = vrot.lane.b32.xlu0 %v524, 4
        %v589 = vpop.permute.xlu0 %588
        %590 = vrot.lane.b32.xlu0 %v525, 4
        %v591 = vpop.permute.xlu0 %590
        %592 = vrot.lane.b32.xlu0 %v526, 4
        %v593 = vpop.permute.xlu0 %592
        %594 = vrot.lane.b32.xlu0 %v527, 4
        %v595 = vpop.permute.xlu0 %594
        %596 = vrot.lane.b32.xlu0 %v528, 4
        %v597 = vpop.permute.xlu0 %596
        %598 = vrot.lane.b32.xlu0 %v529, 4
        %v599 = vpop.permute.xlu0 %598
        %600 = vrot.lane.b32.xlu0 %v530, 4
        %v601 = vpop.permute.xlu0 %600
        %602 = vrot.lane.b32.xlu0 %v531, 4
        %v603 = vpop.permute.xlu0 %602
        %v628 = vsel %vm444, %v484, %v557
        %v629 = vsel %vm444, %v485, %v559
        %v630 = vsel %vm444, %v486, %v561
        %v631 = vsel %vm444, %v487, %v563
        %v632 = vsel %vm444, %v488, %v565
        %v633 = vsel %vm444, %v489, %v567
        %v634 = vsel %vm444, %v490, %v569
        %v635 = vsel %vm444, %v491, %v571
        %v636 = vsel %vm444, %v492, %v573
        %v637 = vsel %vm444, %v493, %v575
        %v638 = vsel %vm444, %v494, %v577
        %v639 = vsel %vm444, %v495, %v579
        %v640 = vsel %vm444, %v496, %v581
        %v641 = vsel %vm444, %v497, %v583
        %v642 = vsel %vm444, %v498, %v585
        %v643 = vsel %vm444, %v499, %v587
        %v644 = vsel %vm444, %v500, %v589
        %v645 = vsel %vm444, %v501, %v591
        %v646 = vsel %vm444, %v502, %v593
        %v647 = vsel %vm444, %v503, %v595
        %v648 = vsel %vm444, %v504, %v597
        %v649 = vsel %vm444, %v505, %v599
        %v650 = vsel %vm444, %v506, %v601
        %v651 = vsel %vm444, %v507, %v603
        %v652 = vld [vmem:[#allocation9] sm:$0xff]
        %vm653 = vcmask 64512
        %v655 = vsel %vm653, %v628, 0
        %v658 = vsel %vm653, %v629, 0
        %v661 = vsel %vm653, %v630, 0
        %v664 = vsel %vm653, %v631, 0
        %v667 = vsel %vm653, %v632, 0
        %v670 = vsel %vm653, %v633, 0
        %v673 = vsel %vm653, %v634, 0
        %v676 = vsel %vm653, %v635, 0
        %v679 = vsel %vm653, %v636, 0
        %v682 = vsel %vm653, %v637, 0
        %v685 = vsel %vm653, %v638, 0
        %v688 = vsel %vm653, %v639, 0
        %v691 = vsel %vm653, %v640, 0
        %v694 = vsel %vm653, %v641, 0
        %v697 = vsel %vm653, %v642, 0
        %v700 = vsel %vm653, %v643, 0
        %v703 = vsel %vm653, %v644, 0
        %v706 = vsel %vm653, %v645, 0
        %v709 = vsel %vm653, %v646, 0
        %v712 = vsel %vm653, %v647, 0
        %v715 = vsel %vm653, %v648, 0
        %v718 = vsel %vm653, %v649, 0
        %v721 = vsel %vm653, %v650, 0
        %v724 = vsel %vm653, %v651, 0
        %726 = vmatprep.subr.mxu0 0.0
        %727 = vmatpush1.msra.mxu0 %v652
        %728 = vmatprep.subr.mxu0 0.0
        %729 = vmatpush1.msra.mxu0 0.0
        %730 = vmatprep.subr.mxu0 0.0
        %731 = vmatpush1.msra.mxu0 0.0
        %732 = vmatprep.subr.mxu0 0.0
        %733 = vmatpush1.msra.mxu0 0.0
        %734 = vmatprep.subr.mxu0 0.0
        %735 = vmatpush1.msra.mxu0 0.0
        %736 = vmatprep.subr.mxu0 0.0
        %737 = vmatpush1.msra.mxu0 0.0
        %738 = vmatprep.subr.mxu0 0.0
        %739 = vmatpush1.msra.mxu0 0.0
        %740 = vmatprep.subr.mxu0 0.0
        %741 = vmatpush1.msra.mxu0 0.0
        %742 = vmatprep.subr.mxu0 0.0
        %743 = vmatpush1.msra.mxu0 0.0
        %744 = vmatprep.subr.mxu0 0.0
        %745 = vmatpush1.msra.mxu0 0.0
        %746 = vmatprep.subr.mxu0 0.0
        %747 = vmatpush1.msra.mxu0 0.0
        %748 = vmatprep.subr.mxu0 0.0
        %749 = vmatpush1.msra.mxu0 0.0
        %750 = vmatprep.subr.mxu0 0.0
        %751 = vmatpush1.msra.mxu0 0.0
        %752 = vmatprep.subr.mxu0 0.0
        %753 = vmatpush1.msra.mxu0 0.0
        %754 = vmatprep.subr.mxu0 0.0
        %755 = vmatpush1.msra.mxu0 0.0
        %756 = vmatprep.subr.mxu0 0.0
        %757 = vmatpush1.msra.mxu0 0.0
        %758 = vmatprep.subr.mxu0 0.0
        %759 = vmatpush1.msra.mxu0 0.0
        %760 = vmatprep.subr.mxu0 0.0
        %761 = vmatpush1.msra.mxu0 0.0
        %762 = vmatprep.subr.mxu0 0.0
        %763 = vmatpush1.msra.mxu0 0.0
        %764 = vmatprep.subr.mxu0 0.0
        %765 = vmatpush1.msra.mxu0 0.0
        %766 = vmatprep.subr.mxu0 0.0
        %767 = vmatpush1.msra.mxu0 0.0
        %768 = vmatprep.subr.mxu0 0.0
        %769 = vmatpush1.msra.mxu0 0.0
        %770 = vmatprep.subr.mxu0 0.0
        %771 = vmatpush1.msra.mxu0 0.0
        %772 = vmatprep.subr.mxu0 0.0
        %773 = vmatpush1.msra.mxu0 0.0
        %774 = vmatprep.subr.mxu0 0.0
        %775 = vmatpush1.msra.mxu0 0.0
        %776 = vmatprep.subr.mxu0 0.0
        %777 = vmatpush1.msra.mxu0 0.0
        %778 = vmatprep.subr.mxu0 0.0
        %779 = vmatpush1.msra.mxu0 0.0
        %780 = vmatprep.subr.mxu0 0.0
        %781 = vmatpush1.msra.mxu0 0.0
        %782 = vmatprep.subr.mxu0 0.0
        %783 = vmatpush1.msra.mxu0 0.0
        %784 = vmatprep.subr.mxu0 0.0
        %785 = vmatpush1.msra.mxu0 0.0
        %786 = vmatprep.subr.mxu0 0.0
        %787 = vmatpush1.msra.mxu0 0.0
        %788 = vmatprep.subr.mxu0 0.0
        %789 = vmatpush1.msra.mxu0 0.0
        %790 = vmatprep.mubr.f32.mxu0 0.0
        %791 = vmatmul.mubr.f32.gmra.mrb[0].mxu0 %v655
        %v792 = vpop.f32.mrb[0].mxu0
        %v793 = vadd.f32 0.0, %v792
        %v794 = vpop.f32.mrb[0].mxu0
        %795 = vmatprep.mubr.f32.mxu0 0.0
        %796 = vmatmul.mubr.f32.gmra.mrb[0].mxu0 %v658
        %v797 = vpop.f32.mrb[0].mxu0
        %v798 = vadd.f32 0.0, %v797
        %v799 = vpop.f32.mrb[0].mxu0
        %800 = vmatprep.mubr.f32.mxu0 0.0
        %801 = vmatmul.mubr.f32.gmra.mrb[0].mxu0 %v661
        %v802 = vpop.f32.mrb[0].mxu0
        %v803 = vadd.f32 0.0, %v802
        %v804 = vpop.f32.mrb[0].mxu0
        %805 = vmatprep.mubr.f32.mxu0 0.0
        %806 = vmatmul.mubr.f32.gmra.mrb[0].mxu0 %v664
        %v807 = vpop.f32.mrb[0].mxu0
        %v808 = vadd.f32 0.0, %v807
        %v809 = vpop.f32.mrb[0].mxu0
        %810 = vmatprep.mubr.f32.mxu0 0.0
        %811 = vmatmul.mubr.f32.gmra.mrb[0].mxu0 %v667
        %v812 = vpop.f32.mrb[0].mxu0
        %v813 = vadd.f32 0.0, %v812
        %v814 = vpop.f32.mrb[0].mxu0
        %815 = vmatprep.mubr.f32.mxu0 0.0
        %816 = vmatmul.mubr.f32.gmra.mrb[0].mxu0 %v670
        %v817 = vpop.f32.mrb[0].mxu0
        %v818 = vadd.f32 0.0, %v817
        %v819 = vpop.f32.mrb[0].mxu0
        %820 = vmatprep.mubr.f32.mxu0 0.0
        %821 = vmatmul.mubr.f32.gmra.mrb[0].mxu0 %v673
        %v822 = vpop.f32.mrb[0].mxu0
        %v823 = vadd.f32 0.0, %v822
        %v824 = vpop.f32.mrb[0].mxu0
        %825 = vmatprep.mubr.f32.mxu0 0.0
        %826 = vmatmul.mubr.f32.gmra.mrb[0].mxu0 %v676
        %v827 = vpop.f32.mrb[0].mxu0
        %v828 = vadd.f32 0.0, %v827
        %v829 = vpop.f32.mrb[0].mxu0
        %830 = vmatprep.mubr.f32.mxu0 0.0
        %831 = vmatmul.mubr.f32.gmra.mrb[0].mxu0 %v679
        %v832 = vpop.f32.mrb[0].mxu0
        %v833 = vadd.f32 0.0, %v832
        %v834 = vpop.f32.mrb[0].mxu0
        %835 = vmatprep.mubr.f32.mxu0 0.0
        %836 = vmatmul.mubr.f32.gmra.mrb[0].mxu0 %v682
        %v837 = vpop.f32.mrb[0].mxu0
        %v838 = vadd.f32 0.0, %v837
        %v839 = vpop.f32.mrb[0].mxu0
        %840 = vmatprep.mubr.f32.mxu0 0.0
        %841 = vmatmul.mubr.f32.gmra.mrb[0].mxu0 %v685
        %v842 = vpop.f32.mrb[0].mxu0
        %v843 = vadd.f32 0.0, %v842
        %v844 = vpop.f32.mrb[0].mxu0
        %845 = vmatprep.mubr.f32.mxu0 0.0
        %846 = vmatmul.mubr.f32.gmra.mrb[0].mxu0 %v688
        %v847 = vpop.f32.mrb[0].mxu0
        %v848 = vadd.f32 0.0, %v847
        %v849 = vpop.f32.mrb[0].mxu0
        %850 = vmatprep.mubr.f32.mxu0 0.0
        %851 = vmatmul.mubr.f32.gmra.mrb[0].mxu0 %v691
        %v852 = vpop.f32.mrb[0].mxu0
        %v853 = vadd.f32 0.0, %v852
        %v854 = vpop.f32.mrb[0].mxu0
        %855 = vmatprep.mubr.f32.mxu0 0.0
        %856 = vmatmul.mubr.f32.gmra.mrb[0].mxu0 %v694
        %v857 = vpop.f32.mrb[0].mxu0
        %v858 = vadd.f32 0.0, %v857
        %v859 = vpop.f32.mrb[0].mxu0
        %860 = vmatprep.mubr.f32.mxu0 0.0
        %861 = vmatmul.mubr.f32.gmra.mrb[0].mxu0 %v697
        %v862 = vpop.f32.mrb[0].mxu0
        %v863 = vadd.f32 0.0, %v862
        %v864 = vpop.f32.mrb[0].mxu0
        %865 = vmatprep.mubr.f32.mxu0 0.0
        %866 = vmatmul.mubr.f32.gmra.mrb[0].mxu0 %v700
        %v867 = vpop.f32.mrb[0].mxu0
        %v868 = vadd.f32 0.0, %v867
        %v869 = vpop.f32.mrb[0].mxu0
        %870 = vmatprep.mubr.f32.mxu0 0.0
        %871 = vmatmul.mubr.f32.gmra.mrb[0].mxu0 %v703
        %v872 = vpop.f32.mrb[0].mxu0
        %v873 = vadd.f32 0.0, %v872
        %v874 = vpop.f32.mrb[0].mxu0
        %875 = vmatprep.mubr.f32.mxu0 0.0
        %876 = vmatmul.mubr.f32.gmra.mrb[0].mxu0 %v706
        %v877 = vpop.f32.mrb[0].mxu0
        %v878 = vadd.f32 0.0, %v877
        %v879 = vpop.f32.mrb[0].mxu0
        %880 = vmatprep.mubr.f32.mxu0 0.0
        %881 = vmatmul.mubr.f32.gmra.mrb[0].mxu0 %v709
        %v882 = vpop.f32.mrb[0].mxu0
        %v883 = vadd.f32 0.0, %v882
        %v884 = vpop.f32.mrb[0].mxu0
        %885 = vmatprep.mubr.f32.mxu0 0.0
        %886 = vmatmul.mubr.f32.gmra.mrb[0].mxu0 %v712
        %v887 = vpop.f32.mrb[0].mxu0
        %v888 = vadd.f32 0.0, %v887
        %v889 = vpop.f32.mrb[0].mxu0
        %890 = vmatprep.mubr.f32.mxu0 0.0
        %891 = vmatmul.mubr.f32.gmra.mrb[0].mxu0 %v715
        %v892 = vpop.f32.mrb[0].mxu0
        %v893 = vadd.f32 0.0, %v892
        %v894 = vpop.f32.mrb[0].mxu0
        %895 = vmatprep.mubr.f32.mxu0 0.0
        %896 = vmatmul.mubr.f32.gmra.mrb[0].mxu0 %v718
        %v897 = vpop.f32.mrb[0].mxu0
        %v898 = vadd.f32 0.0, %v897
        %v899 = vpop.f32.mrb[0].mxu0
        %900 = vmatprep.mubr.f32.mxu0 0.0
        %901 = vmatmul.mubr.f32.gmra.mrb[0].mxu0 %v721
        %v902 = vpop.f32.mrb[0].mxu0
        %v903 = vadd.f32 0.0, %v902
        %v904 = vpop.f32.mrb[0].mxu0
        %905 = vmatprep.mubr.f32.mxu0 0.0
        %906 = vmatmul.mubr.f32.gmra.mrb[0].mxu0 %v724
        %v907 = vpop.f32.mrb[0].mxu0
        %v908 = vadd.f32 0.0, %v907
        %v909 = vpop.f32.mrb[0].mxu0
        %910 = vdwg.mxu0
        %vm935 = vcmask 1046528
        %v936 = vrot.slane %v793, 1
        %v937 = vrot.slane %v798, 1
        %v938 = vsel %vm935, %v936, %v937
        %v939 = vrot.slane %v803, 1
        %v940 = vsel %vm935, %v937, %v939
        %v941 = vrot.slane %v808, 1
        %v942 = vrot.slane %v813, 1
        %v943 = vsel %vm935, %v941, %v942
        %v944 = vrot.slane %v818, 1
        %v945 = vsel %vm935, %v942, %v944
        %v946 = vrot.slane %v823, 1
        %v947 = vrot.slane %v828, 1
        %v948 = vsel %vm935, %v946, %v947
        %v949 = vrot.slane %v833, 1
        %v950 = vsel %vm935, %v947, %v949
        %v951 = vrot.slane %v838, 1
        %v952 = vrot.slane %v843, 1
        %v953 = vsel %vm935, %v951, %v952
        %v954 = vrot.slane %v848, 1
        %v955 = vsel %vm935, %v952, %v954
        %v956 = vrot.slane %v853, 1
        %v957 = vrot.slane %v858, 1
        %v958 = vsel %vm935, %v956, %v957
        %v959 = vrot.slane %v863, 1
        %v960 = vsel %vm935, %v957, %v959
        %v961 = vrot.slane %v868, 1
        %v962 = vrot.slane %v873, 1
        %v963 = vsel %vm935, %v961, %v962
        %v964 = vrot.slane %v878, 1
        %v965 = vsel %vm935, %v962, %v964
        %v966 = vrot.slane %v883, 1
        %v967 = vrot.slane %v888, 1
        %v968 = vsel %vm935, %v966, %v967
        %v969 = vrot.slane %v893, 1
        %v970 = vsel %vm935, %v967, %v969
        %v971 = vrot.slane %v898, 1
        %v972 = vrot.slane %v903, 1
        %v973 = vsel %vm935, %v971, %v972
        %v974 = vrot.slane %v908, 1
        %v975 = vsel %vm935, %v972, %v974
        %976 = vrot.lane.b32.xlu0 %v938, 120
        %v977 = vpop.permute.xlu0 %976
        %978 = vrot.lane.b32.xlu0 %v940, 120
        %v979 = vpop.permute.xlu0 %978
        %980 = vrot.lane.b32.xlu0 %v943, 120
        %v981 = vpop.permute.xlu0 %980
        %982 = vrot.lane.b32.xlu0 %v945, 120
        %v983 = vpop.permute.xlu0 %982
        %984 = vrot.lane.b32.xlu0 %v948, 120
        %v985 = vpop.permute.xlu0 %984
        %986 = vrot.lane.b32.xlu0 %v950, 120
        %v987 = vpop.permute.xlu0 %986
        %988 = vrot.lane.b32.xlu0 %v953, 120
        %v989 = vpop.permute.xlu0 %988
        %990 = vrot.lane.b32.xlu0 %v955, 120
        %v991 = vpop.permute.xlu0 %990
        %992 = vrot.lane.b32.xlu0 %v958, 120
        %v993 = vpop.permute.xlu0 %992
        %994 = vrot.lane.b32.xlu0 %v960, 120
        %v995 = vpop.permute.xlu0 %994
        %996 = vrot.lane.b32.xlu0 %v963, 120
        %v997 = vpop.permute.xlu0 %996
        %998 = vrot.lane.b32.xlu0 %v965, 120
        %v999 = vpop.permute.xlu0 %998
        %1000 = vrot.lane.b32.xlu0 %v968, 120
        %v1001 = vpop.permute.xlu0 %1000
        %1002 = vrot.lane.b32.xlu0 %v970, 120
        %v1003 = vpop.permute.xlu0 %1002
        %1004 = vrot.lane.b32.xlu0 %v973, 120
        %v1005 = vpop.permute.xlu0 %1004
        %1006 = vrot.lane.b32.xlu0 %v975, 120
        %v1007 = vpop.permute.xlu0 %1006
        %v1024 = vadd.f32 %v793, %v977
        %v1025 = vadd.f32 %v798, %v979
        %v1026 = vadd.f32 %v808, %v981
        %v1027 = vadd.f32 %v813, %v983
        %v1028 = vadd.f32 %v823, %v985
        %v1029 = vadd.f32 %v828, %v987
        %v1030 = vadd.f32 %v838, %v989
        %v1031 = vadd.f32 %v843, %v991
        %v1032 = vadd.f32 %v853, %v993
        %v1033 = vadd.f32 %v858, %v995
        %v1034 = vadd.f32 %v868, %v997
        %v1035 = vadd.f32 %v873, %v999
        %v1036 = vadd.f32 %v883, %v1001
        %v1037 = vadd.f32 %v888, %v1003
        %v1038 = vadd.f32 %v898, %v1005
        %v1039 = vadd.f32 %v903, %v1007
        %1040 = vrot.lane.b32.xlu0 %v939, 120
        %v1041 = vpop.permute.xlu0 %1040
        %1042 = vrot.lane.b32.xlu0 %v944, 120
        %v1043 = vpop.permute.xlu0 %1042
        %1044 = vrot.lane.b32.xlu0 %v949, 120
        %v1045 = vpop.permute.xlu0 %1044
        %1046 = vrot.lane.b32.xlu0 %v954, 120
        %v1047 = vpop.permute.xlu0 %1046
        %1048 = vrot.lane.b32.xlu0 %v959, 120
        %v1049 = vpop.permute.xlu0 %1048
        %1050 = vrot.lane.b32.xlu0 %v964, 120
        %v1051 = vpop.permute.xlu0 %1050
        %1052 = vrot.lane.b32.xlu0 %v969, 120
        %v1053 = vpop.permute.xlu0 %1052
        %1054 = vrot.lane.b32.xlu0 %v974, 120
        %v1055 = vpop.permute.xlu0 %1054
        %v1064 = vadd.f32 %v803, %v1041
        %v1065 = vadd.f32 %v818, %v1043
        %v1066 = vadd.f32 %v833, %v1045
        %v1067 = vadd.f32 %v848, %v1047
        %v1068 = vadd.f32 %v863, %v1049
        %v1069 = vadd.f32 %v878, %v1051
        %v1070 = vadd.f32 %v893, %v1053
        %v1071 = vadd.f32 %v908, %v1055
        %v1096 = vrot.slane %v1024, 1
        %v1097 = vrot.slane %v1025, 1
        %v1098 = vsel %vm935, %v1096, %v1097
        %v1099 = vrot.slane %v1064, 1
        %v1100 = vsel %vm935, %v1097, %v1099
        %v1101 = vrot.slane %v1026, 1
        %v1102 = vrot.slane %v1027, 1
        %v1103 = vsel %vm935, %v1101, %v1102
        %v1104 = vrot.slane %v1065, 1
        %v1105 = vsel %vm935, %v1102, %v1104
        %v1106 = vrot.slane %v1028, 1
        %v1107 = vrot.slane %v1029, 1
        %v1108 = vsel %vm935, %v1106, %v1107
        %v1109 = vrot.slane %v1066, 1
        %v1110 = vsel %vm935, %v1107, %v1109
        %v1111 = vrot.slane %v1030, 1
        %v1112 = vrot.slane %v1031, 1
        %v1113 = vsel %vm935, %v1111, %v1112
        %v1114 = vrot.slane %v1067, 1
        %v1115 = vsel %vm935, %v1112, %v1114
        %v1116 = vrot.slane %v1032, 1
        %v1117 = vrot.slane %v1033, 1
        %v1118 = vsel %vm935, %v1116, %v1117
        %v1119 = vrot.slane %v1068, 1
        %v1120 = vsel %vm935, %v1117, %v1119
        %v1121 = vrot.slane %v1034, 1
        %v1122 = vrot.slane %v1035, 1
        %v1123 = vsel %vm935, %v1121, %v1122
        %v1124 = vrot.slane %v1069, 1
        %v1125 = vsel %vm935, %v1122, %v1124
        %v1126 = vrot.slane %v1036, 1
        %v1127 = vrot.slane %v1037, 1
        %v1128 = vsel %vm935, %v1126, %v1127
        %v1129 = vrot.slane %v1070, 1
        %v1130 = vsel %vm935, %v1127, %v1129
        %v1131 = vrot.slane %v1038, 1
        %v1132 = vrot.slane %v1039, 1
        %v1133 = vsel %vm935, %v1131, %v1132
        %v1134 = vrot.slane %v1071, 1
        %v1135 = vsel %vm935, %v1132, %v1134
        %v1152 = vsel %vm444, %v1024, %v1098
        %v1153 = vsel %vm444, %v1025, %v1100
        %v1154 = vsel %vm444, %v1026, %v1103
        %v1155 = vsel %vm444, %v1027, %v1105
        %v1156 = vsel %vm444, %v1028, %v1108
        %v1157 = vsel %vm444, %v1029, %v1110
        %v1158 = vsel %vm444, %v1030, %v1113
        %v1159 = vsel %vm444, %v1031, %v1115
        %v1160 = vsel %vm444, %v1032, %v1118
        %v1161 = vsel %vm444, %v1033, %v1120
        %v1162 = vsel %vm444, %v1034, %v1123
        %v1163 = vsel %vm444, %v1035, %v1125
        %v1164 = vsel %vm444, %v1036, %v1128
        %v1165 = vsel %vm444, %v1037, %v1130
        %v1166 = vsel %vm444, %v1038, %v1133
        %v1167 = vsel %vm444, %v1039, %v1135
        %v1169 = vlaneseq
        %v1170 = vshrl.u32 %v1169, 7
        %v1171 = vsub.s32 0, %v1170
        %v1172 = vrot.slane %v483, %v1171
        %v1174 = vadd.f32 %v1152, %v1172
        %v1175 = vadd.f32 %v1153, %v1172
        %v1176 = vadd.f32 %v1154, %v1172
        %v1177 = vadd.f32 %v1155, %v1172
        %v1178 = vadd.f32 %v1156, %v1172
        %v1179 = vadd.f32 %v1157, %v1172
        %v1180 = vadd.f32 %v1158, %v1172
        %v1181 = vadd.f32 %v1159, %v1172
        %v1182 = vadd.f32 %v1160, %v1172
        %v1183 = vadd.f32 %v1161, %v1172
        %v1184 = vadd.f32 %v1162, %v1172
        %v1185 = vadd.f32 %v1163, %v1172
        %v1186 = vadd.f32 %v1164, %v1172
        %v1187 = vadd.f32 %v1165, %v1172
        %v1188 = vadd.f32 %v1166, %v1172
        %v1189 = vadd.f32 %v1167, %v1172
        %1190 = vst.msk [vmem:[%s397] sm:$0xff] %vm653, %v1174
        %1191 = vst.msk [vmem:[%s397 + $0x8] sm:$0xff] %vm653, %v1175
        %1192 = vst.msk [vmem:[%s397 + $0x20] sm:$0xff] %vm653, %v1176
        %1193 = vst.msk [vmem:[%s397 + $0x28] sm:$0xff] %vm653, %v1177
        %1194 = vst.msk [vmem:[%s397 + $0x40] sm:$0xff] %vm653, %v1178
        %1195 = vst.msk [vmem:[%s397 + $0x48] sm:$0xff] %vm653, %v1179
        %1196 = vst.msk [vmem:[%s397 + $0x60] sm:$0xff] %vm653, %v1180
        %1197 = vst.msk [vmem:[%s397 + $0x68] sm:$0xff] %vm653, %v1181
        %1198 = vst.msk [vmem:[%s397 + $0x80] sm:$0xff] %vm653, %v1182
        %1199 = vst.msk [vmem:[%s397 + $0x88] sm:$0xff] %vm653, %v1183
        %1200 = vst.msk [vmem:[%s397 + $0xa0] sm:$0xff] %vm653, %v1184
        %1201 = vst.msk [vmem:[%s397 + $0xa8] sm:$0xff] %vm653, %v1185
        %1202 = vst.msk [vmem:[%s397 + $0xc0] sm:$0xff] %vm653, %v1186
        %1203 = vst.msk [vmem:[%s397 + $0xc8] sm:$0xff] %vm653, %v1187
        %1204 = vst.msk [vmem:[%s397 + $0xe0] sm:$0xff] %vm653, %v1188
        %1205 = vst.msk [vmem:[%s397 + $0xe8] sm:$0xff] %vm653, %v1189
        %v1206 = vld [vmem:[%s466] sm:$0xff]
        %v1207 = vld [vmem:[%s466 + $0x8] sm:$0xff]
        %v1208 = vld [vmem:[%s466 + $0x10] sm:$0xff]
        %v1209 = vld [vmem:[%s466 + $0x18] sm:$0xff]
        %v1210 = vld [vmem:[%s466 + $0x20] sm:$0xff]
        %v1211 = vld [vmem:[%s466 + $0x28] sm:$0xff]
        %v1212 = vld [vmem:[%s466 + $0x30] sm:$0xff]
        %v1213 = vld [vmem:[%s466 + $0x38] sm:$0xff]
        %v1214 = vld [vmem:[%s466 + $0x40] sm:$0xff]
        %v1215 = vld [vmem:[%s466 + $0x48] sm:$0xff]
        %v1216 = vld [vmem:[%s466 + $0x50] sm:$0xff]
        %v1217 = vld [vmem:[%s466 + $0x58] sm:$0xff]
        %v1218 = vld [vmem:[%s466 + $0x60] sm:$0xff]
        %v1219 = vld [vmem:[%s466 + $0x68] sm:$0xff]
        %v1220 = vld [vmem:[%s466 + $0x70] sm:$0xff]
        %v1221 = vld [vmem:[%s466 + $0x78] sm:$0xff]
        %v1222 = vld [vmem:[%s466 + $0x80] sm:$0xff]
        %v1223 = vld [vmem:[%s466 + $0x88] sm:$0xff]
        %v1224 = vld [vmem:[%s466 + $0x90] sm:$0xff]
        %v1225 = vld [vmem:[%s466 + $0x98] sm:$0xff]
        %v1226 = vld [vmem:[%s466 + $0xa0] sm:$0xff]
        %v1227 = vld [vmem:[%s466 + $0xa8] sm:$0xff]
        %v1228 = vld [vmem:[%s466 + $0xb0] sm:$0xff]
        %v1229 = vld [vmem:[%s466 + $0xb8] sm:$0xff]
        %s1230 = scalar_lea.vmem [#allocation2], 48
        %v1231 = vld [vmem:[%s1230] sm:$0xff]
        %v1232 = vld [vmem:[%s1230 + $0x8] sm:$0xff]
        %v1233 = vld [vmem:[%s1230 + $0x10] sm:$0xff]
        %v1234 = vld [vmem:[%s1230 + $0x18] sm:$0xff]
        %v1235 = vld [vmem:[%s1230 + $0x20] sm:$0xff]
        %v1236 = vld [vmem:[%s1230 + $0x28] sm:$0xff]
        %v1237 = vld [vmem:[%s1230 + $0x30] sm:$0xff]
        %v1238 = vld [vmem:[%s1230 + $0x38] sm:$0xff]
        %v1239 = vld [vmem:[%s1230 + $0x40] sm:$0xff]
        %v1240 = vld [vmem:[%s1230 + $0x48] sm:$0xff]
        %v1241 = vld [vmem:[%s1230 + $0x50] sm:$0xff]
        %v1242 = vld [vmem:[%s1230 + $0x58] sm:$0xff]
        %v1243 = vld [vmem:[%s1230 + $0x60] sm:$0xff]
        %v1244 = vld [vmem:[%s1230 + $0x68] sm:$0xff]
        %v1245 = vld [vmem:[%s1230 + $0x70] sm:$0xff]
        %v1246 = vld [vmem:[%s1230 + $0x78] sm:$0xff]
        %v1247 = vld [vmem:[%s1230 + $0x80] sm:$0xff]
        %v1248 = vld [vmem:[%s1230 + $0x88] sm:$0xff]
        %v1249 = vld [vmem:[%s1230 + $0x90] sm:$0xff]
        %v1250 = vld [vmem:[%s1230 + $0x98] sm:$0xff]
        %v1251 = vld [vmem:[%s1230 + $0xa0] sm:$0xff]
        %v1252 = vld [vmem:[%s1230 + $0xa8] sm:$0xff]
        %v1253 = vld [vmem:[%s1230 + $0xb0] sm:$0xff]
        %v1254 = vld [vmem:[%s1230 + $0xb8] sm:$0xff]
        %1279 = vrot.lane.b32.xlu0 %v1231, 4
        %v1280 = vpop.permute.xlu0 %1279
        %1281 = vrot.lane.b32.xlu0 %v1232, 4
        %v1282 = vpop.permute.xlu0 %1281
        %1283 = vrot.lane.b32.xlu0 %v1233, 4
        %v1284 = vpop.permute.xlu0 %1283
        %1285 = vrot.lane.b32.xlu0 %v1234, 4
        %v1286 = vpop.permute.xlu0 %1285
        %1287 = vrot.lane.b32.xlu0 %v1235, 4
        %v1288 = vpop.permute.xlu0 %1287
        %1289 = vrot.lane.b32.xlu0 %v1236, 4
        %v1290 = vpop.permute.xlu0 %1289
        %1291 = vrot.lane.b32.xlu0 %v1237, 4
        %v1292 = vpop.permute.xlu0 %1291
        %1293 = vrot.lane.b32.xlu0 %v1238, 4
        %v1294 = vpop.permute.xlu0 %1293
        %1295 = vrot.lane.b32.xlu0 %v1239, 4
        %v1296 = vpop.permute.xlu0 %1295
        %1297 = vrot.lane.b32.xlu0 %v1240, 4
        %v1298 = vpop.permute.xlu0 %1297
        %1299 = vrot.lane.b32.xlu0 %v1241, 4
        %v1300 = vpop.permute.xlu0 %1299
        %1301 = vrot.lane.b32.xlu0 %v1242, 4
        %v1302 = vpop.permute.xlu0 %1301
        %1303 = vrot.lane.b32.xlu0 %v1243, 4
        %v1304 = vpop.permute.xlu0 %1303
        %1305 = vrot.lane.b32.xlu0 %v1244, 4
        %v1306 = vpop.permute.xlu0 %1305
        %1307 = vrot.lane.b32.xlu0 %v1245, 4
        %v1308 = vpop.permute.xlu0 %1307
        %1309 = vrot.lane.b32.xlu0 %v1246, 4
        %v1310 = vpop.permute.xlu0 %1309
        %1311 = vrot.lane.b32.xlu0 %v1247, 4
        %v1312 = vpop.permute.xlu0 %1311
        %1313 = vrot.lane.b32.xlu0 %v1248, 4
        %v1314 = vpop.permute.xlu0 %1313
        %1315 = vrot.lane.b32.xlu0 %v1249, 4
        %v1316 = vpop.permute.xlu0 %1315
        %1317 = vrot.lane.b32.xlu0 %v1250, 4
        %v1318 = vpop.permute.xlu0 %1317
        %1319 = vrot.lane.b32.xlu0 %v1251, 4
        %v1320 = vpop.permute.xlu0 %1319
        %1321 = vrot.lane.b32.xlu0 %v1252, 4
        %v1322 = vpop.permute.xlu0 %1321
        %1323 = vrot.lane.b32.xlu0 %v1253, 4
        %v1324 = vpop.permute.xlu0 %1323
        %1325 = vrot.lane.b32.xlu0 %v1254, 4
        %v1326 = vpop.permute.xlu0 %1325
        %v1351 = vsel %vm444, %v1206, %v1280
        %v1352 = vsel %vm444, %v1207, %v1282
        %v1353 = vsel %vm444, %v1208, %v1284
        %v1354 = vsel %vm444, %v1209, %v1286
        %v1355 = vsel %vm444, %v1210, %v1288
        %v1356 = vsel %vm444, %v1211, %v1290
        %v1357 = vsel %vm444, %v1212, %v1292
        %v1358 = vsel %vm444, %v1213, %v1294
        %v1359 = vsel %vm444, %v1214, %v1296
        %v1360 = vsel %vm444, %v1215, %v1298
        %v1361 = vsel %vm444, %v1216, %v1300
        %v1362 = vsel %vm444, %v1217, %v1302
        %v1363 = vsel %vm444, %v1218, %v1304
        %v1364 = vsel %vm444, %v1219, %v1306
        %v1365 = vsel %vm444, %v1220, %v1308
        %v1366 = vsel %vm444, %v1221, %v1310
        %v1367 = vsel %vm444, %v1222, %v1312
        %v1368 = vsel %vm444, %v1223, %v1314
        %v1369 = vsel %vm444, %v1224, %v1316
        %v1370 = vsel %vm444, %v1225, %v1318
        %v1371 = vsel %vm444, %v1226, %v1320
        %v1372 = vsel %vm444, %v1227, %v1322
        %v1373 = vsel %vm444, %v1228, %v1324
        %v1374 = vsel %vm444, %v1229, %v1326
        %s1375 = scalar_lea.vmem [#allocation9], 8
        %v1376 = vld [vmem:[%s1375] sm:$0xff]
        %v1378 = vsel %vm653, %v1351, 0
        %v1381 = vsel %vm653, %v1352, 0
        %v1384 = vsel %vm653, %v1353, 0
        %v1387 = vsel %vm653, %v1354, 0
        %v1390 = vsel %vm653, %v1355, 0
        %v1393 = vsel %vm653, %v1356, 0
        %v1396 = vsel %vm653, %v1357, 0
        %v1399 = vsel %vm653, %v1358, 0
        %v1402 = vsel %vm653, %v1359, 0
        %v1405 = vsel %vm653, %v1360, 0
        %v1408 = vsel %vm653, %v1361, 0
        %v1411 = vsel %vm653, %v1362, 0
        %v1414 = vsel %vm653, %v1363, 0
        %v1417 = vsel %vm653, %v1364, 0
        %v1420 = vsel %vm653, %v1365, 0
        %v1423 = vsel %vm653, %v1366, 0
        %v1426 = vsel %vm653, %v1367, 0
        %v1429 = vsel %vm653, %v1368, 0
        %v1432 = vsel %vm653, %v1369, 0
        %v1435 = vsel %vm653, %v1370, 0
        %v1438 = vsel %vm653, %v1371, 0
        %v1441 = vsel %vm653, %v1372, 0
        %v1444 = vsel %vm653, %v1373, 0
        %v1447 = vsel %vm653, %v1374, 0
        %1449 = vmatprep.subr.mxu0 0.0
        %1450 = vmatpush1.msra.mxu0 %v1376
        %1451 = vmatprep.subr.mxu0 0.0
        %1452 = vmatpush1.msra.mxu0 0.0
        %1453 = vmatprep.subr.mxu0 0.0
        %1454 = vmatpush1.msra.mxu0 0.0
        %1455 = vmatprep.subr.mxu0 0.0
        %1456 = vmatpush1.msra.mxu0 0.0
        %1457 = vmatprep.subr.mxu0 0.0
        %1458 = vmatpush1.msra.mxu0 0.0
        %1459 = vmatprep.subr.mxu0 0.0
        %1460 = vmatpush1.msra.mxu0 0.0
        %1461 = vmatprep.subr.mxu0 0.0
        %1462 = vmatpush1.msra.mxu0 0.0
        %1463 = vmatprep.subr.mxu0 0.0
        %1464 = vmatpush1.msra.mxu0 0.0
        %1465 = vmatprep.subr.mxu0 0.0
        %1466 = vmatpush1.msra.mxu0 0.0
        %1467 = vmatprep.subr.mxu0 0.0
        %1468 = vmatpush1.msra.mxu0 0.0
        %1469 = vmatprep.subr.mxu0 0.0
        %1470 = vmatpush1.msra.mxu0 0.0
        %1471 = vmatprep.subr.mxu0 0.0
        %1472 = vmatpush1.msra.mxu0 0.0
        %1473 = vmatprep.subr.mxu0 0.0
        %1474 = vmatpush1.msra.mxu0 0.0
        %1475 = vmatprep.subr.mxu0 0.0
        %1476 = vmatpush1.msra.mxu0 0.0
        %1477 = vmatprep.subr.mxu0 0.0
        %1478 = vmatpush1.msra.mxu0 0.0
        %1479 = vmatprep.subr.mxu0 0.0
        %1480 = vmatpush1.msra.mxu0 0.0
        %1481 = vmatprep.subr.mxu0 0.0
        %1482 = vmatpush1.msra.mxu0 0.0
        %1483 = vmatprep.subr.mxu0 0.0
        %1484 = vmatpush1.msra.mxu0 0.0
        %1485 = vmatprep.subr.mxu0 0.0
        %1486 = vmatpush1.msra.mxu0 0.0
        %1487 = vmatprep.subr.mxu0 0.0
        %1488 = vmatpush1.msra.mxu0 0.0
        %1489 = vmatprep.subr.mxu0 0.0
        %1490 = vmatpush1.msra.mxu0 0.0
        %1491 = vmatprep.subr.mxu0 0.0
        %1492 = vmatpush1.msra.mxu0 0.0
        %1493 = vmatprep.subr.mxu0 0.0
        %1494 = vmatpush1.msra.mxu0 0.0
        %1495 = vmatprep.subr.mxu0 0.0
        %1496 = vmatpush1.msra.mxu0 0.0
        %1497 = vmatprep.subr.mxu0 0.0
        %1498 = vmatpush1.msra.mxu0 0.0
        %1499 = vmatprep.subr.mxu0 0.0
        %1500 = vmatpush1.msra.mxu0 0.0
        %1501 = vmatprep.subr.mxu0 0.0
        %1502 = vmatpush1.msra.mxu0 0.0
        %1503 = vmatprep.subr.mxu0 0.0
        %1504 = vmatpush1.msra.mxu0 0.0
        %1505 = vmatprep.subr.mxu0 0.0
        %1506 = vmatpush1.msra.mxu0 0.0
        %1507 = vmatprep.subr.mxu0 0.0
        %1508 = vmatpush1.msra.mxu0 0.0
        %1509 = vmatprep.subr.mxu0 0.0
        %1510 = vmatpush1.msra.mxu0 0.0
        %1511 = vmatprep.subr.mxu0 0.0
        %1512 = vmatpush1.msra.mxu0 0.0
        %1513 = vmatprep.mubr.f32.mxu0 0.0
        %1514 = vmatmul.mubr.f32.gmra.mrb[0].mxu0 %v1378
        %v1515 = vpop.f32.mrb[0].mxu0
        %v1516 = vadd.f32 0.0, %v1515
        %v1517 = vpop.f32.mrb[0].mxu0
        %1518 = vmatprep.mubr.f32.mxu0 0.0
        %1519 = vmatmul.mubr.f32.gmra.mrb[0].mxu0 %v1381
        %v1520 = vpop.f32.mrb[0].mxu0
        %v1521 = vadd.f32 0.0, %v1520
        %v1522 = vpop.f32.mrb[0].mxu0
        %1523 = vmatprep.mubr.f32.mxu0 0.0
        %1524 = vmatmul.mubr.f32.gmra.mrb[0].mxu0 %v1384
        %v1525 = vpop.f32.mrb[0].mxu0
        %v1526 = vadd.f32 0.0, %v1525
        %v1527 = vpop.f32.mrb[0].mxu0
        %1528 = vmatprep.mubr.f32.mxu0 0.0
        %1529 = vmatmul.mubr.f32.gmra.mrb[0].mxu0 %v1387
        %v1530 = vpop.f32.mrb[0].mxu0
        %v1531 = vadd.f32 0.0, %v1530
        %v1532 = vpop.f32.mrb[0].mxu0
        %1533 = vmatprep.mubr.f32.mxu0 0.0
        %1534 = vmatmul.mubr.f32.gmra.mrb[0].mxu0 %v1390
        %v1535 = vpop.f32.mrb[0].mxu0
        %v1536 = vadd.f32 0.0, %v1535
        %v1537 = vpop.f32.mrb[0].mxu0
        %1538 = vmatprep.mubr.f32.mxu0 0.0
        %1539 = vmatmul.mubr.f32.gmra.mrb[0].mxu0 %v1393
        %v1540 = vpop.f32.mrb[0].mxu0
        %v1541 = vadd.f32 0.0, %v1540
        %v1542 = vpop.f32.mrb[0].mxu0
        %1543 = vmatprep.mubr.f32.mxu0 0.0
        %1544 = vmatmul.mubr.f32.gmra.mrb[0].mxu0 %v1396
        %v1545 = vpop.f32.mrb[0].mxu0
        %v1546 = vadd.f32 0.0, %v1545
        %v1547 = vpop.f32.mrb[0].mxu0
        %1548 = vmatprep.mubr.f32.mxu0 0.0
        %1549 = vmatmul.mubr.f32.gmra.mrb[0].mxu0 %v1399
        %v1550 = vpop.f32.mrb[0].mxu0
        %v1551 = vadd.f32 0.0, %v1550
        %v1552 = vpop.f32.mrb[0].mxu0
        %1553 = vmatprep.mubr.f32.mxu0 0.0
        %1554 = vmatmul.mubr.f32.gmra.mrb[0].mxu0 %v1402
        %v1555 = vpop.f32.mrb[0].mxu0
        %v1556 = vadd.f32 0.0, %v1555
        %v1557 = vpop.f32.mrb[0].mxu0
        %1558 = vmatprep.mubr.f32.mxu0 0.0
        %1559 = vmatmul.mubr.f32.gmra.mrb[0].mxu0 %v1405
        %v1560 = vpop.f32.mrb[0].mxu0
        %v1561 = vadd.f32 0.0, %v1560
        %v1562 = vpop.f32.mrb[0].mxu0
        %1563 = vmatprep.mubr.f32.mxu0 0.0
        %1564 = vmatmul.mubr.f32.gmra.mrb[0].mxu0 %v1408
        %v1565 = vpop.f32.mrb[0].mxu0
        %v1566 = vadd.f32 0.0, %v1565
        %v1567 = vpop.f32.mrb[0].mxu0
        %1568 = vmatprep.mubr.f32.mxu0 0.0
        %1569 = vmatmul.mubr.f32.gmra.mrb[0].mxu0 %v1411
        %v1570 = vpop.f32.mrb[0].mxu0
        %v1571 = vadd.f32 0.0, %v1570
        %v1572 = vpop.f32.mrb[0].mxu0
        %1573 = vmatprep.mubr.f32.mxu0 0.0
        %1574 = vmatmul.mubr.f32.gmra.mrb[0].mxu0 %v1414
        %v1575 = vpop.f32.mrb[0].mxu0
        %v1576 = vadd.f32 0.0, %v1575
        %v1577 = vpop.f32.mrb[0].mxu0
        %1578 = vmatprep.mubr.f32.mxu0 0.0
        %1579 = vmatmul.mubr.f32.gmra.mrb[0].mxu0 %v1417
        %v1580 = vpop.f32.mrb[0].mxu0
        %v1581 = vadd.f32 0.0, %v1580
        %v1582 = vpop.f32.mrb[0].mxu0
        %1583 = vmatprep.mubr.f32.mxu0 0.0
        %1584 = vmatmul.mubr.f32.gmra.mrb[0].mxu0 %v1420
        %v1585 = vpop.f32.mrb[0].mxu0
        %v1586 = vadd.f32 0.0, %v1585
        %v1587 = vpop.f32.mrb[0].mxu0
        %1588 = vmatprep.mubr.f32.mxu0 0.0
        %1589 = vmatmul.mubr.f32.gmra.mrb[0].mxu0 %v1423
        %v1590 = vpop.f32.mrb[0].mxu0
        %v1591 = vadd.f32 0.0, %v1590
        %v1592 = vpop.f32.mrb[0].mxu0
        %1593 = vmatprep.mubr.f32.mxu0 0.0
        %1594 = vmatmul.mubr.f32.gmra.mrb[0].mxu0 %v1426
        %v1595 = vpop.f32.mrb[0].mxu0
        %v1596 = vadd.f32 0.0, %v1595
        %v1597 = vpop.f32.mrb[0].mxu0
        %1598 = vmatprep.mubr.f32.mxu0 0.0
        %1599 = vmatmul.mubr.f32.gmra.mrb[0].mxu0 %v1429
        %v1600 = vpop.f32.mrb[0].mxu0
        %v1601 = vadd.f32 0.0, %v1600
        %v1602 = vpop.f32.mrb[0].mxu0
        %1603 = vmatprep.mubr.f32.mxu0 0.0
        %1604 = vmatmul.mubr.f32.gmra.mrb[0].mxu0 %v1432
        %v1605 = vpop.f32.mrb[0].mxu0
        %v1606 = vadd.f32 0.0, %v1605
        %v1607 = vpop.f32.mrb[0].mxu0
        %1608 = vmatprep.mubr.f32.mxu0 0.0
        %1609 = vmatmul.mubr.f32.gmra.mrb[0].mxu0 %v1435
        %v1610 = vpop.f32.mrb[0].mxu0
        %v1611 = vadd.f32 0.0, %v1610
        %v1612 = vpop.f32.mrb[0].mxu0
        %1613 = vmatprep.mubr.f32.mxu0 0.0
        %1614 = vmatmul.mubr.f32.gmra.mrb[0].mxu0 %v1438
        %v1615 = vpop.f32.mrb[0].mxu0
        %v1616 = vadd.f32 0.0, %v1615
        %v1617 = vpop.f32.mrb[0].mxu0
        %1618 = vmatprep.mubr.f32.mxu0 0.0
        %1619 = vmatmul.mubr.f32.gmra.mrb[0].mxu0 %v1441
        %v1620 = vpop.f32.mrb[0].mxu0
        %v1621 = vadd.f32 0.0, %v1620
        %v1622 = vpop.f32.mrb[0].mxu0
        %1623 = vmatprep.mubr.f32.mxu0 0.0
        %1624 = vmatmul.mubr.f32.gmra.mrb[0].mxu0 %v1444
        %v1625 = vpop.f32.mrb[0].mxu0
        %v1626 = vadd.f32 0.0, %v1625
        %v1627 = vpop.f32.mrb[0].mxu0
        %1628 = vmatprep.mubr.f32.mxu0 0.0
        %1629 = vmatmul.mubr.f32.gmra.mrb[0].mxu0 %v1447
        %v1630 = vpop.f32.mrb[0].mxu0
        %v1631 = vadd.f32 0.0, %v1630
        %v1632 = vpop.f32.mrb[0].mxu0
        %1633 = vdwg.mxu0
        %v1658 = vrot.slane %v1516, 1
        %v1659 = vrot.slane %v1521, 1
        %v1660 = vsel %vm935, %v1658, %v1659
        %v1661 = vrot.slane %v1526, 1
        %v1662 = vsel %vm935, %v1659, %v1661
        %v1663 = vrot.slane %v1531, 1
        %v1664 = vrot.slane %v1536, 1
        %v1665 = vsel %vm935, %v1663, %v1664
        %v1666 = vrot.slane %v1541, 1
        %v1667 = vsel %vm935, %v1664, %v1666
        %v1668 = vrot.slane %v1546, 1
        %v1669 = vrot.slane %v1551, 1
        %v1670 = vsel %vm935, %v1668, %v1669
        %v1671 = vrot.slane %v1556, 1
        %v1672 = vsel %vm935, %v1669, %v1671
        %v1673 = vrot.slane %v1561, 1
        %v1674 = vrot.slane %v1566, 1
        %v1675 = vsel %vm935, %v1673, %v1674
        %v1676 = vrot.slane %v1571, 1
        %v1677 = vsel %vm935, %v1674, %v1676
        %v1678 = vrot.slane %v1576, 1
        %v1679 = vrot.slane %v1581, 1
        %v1680 = vsel %vm935, %v1678, %v1679
        %v1681 = vrot.slane %v1586, 1
        %v1682 = vsel %vm935, %v1679, %v1681
        %v1683 = vrot.slane %v1591, 1
        %v1684 = vrot.slane %v1596, 1
        %v1685 = vsel %vm935, %v1683, %v1684
        %v1686 = vrot.slane %v1601, 1
        %v1687 = vsel %vm935, %v1684, %v1686
        %v1688 = vrot.slane %v1606, 1
        %v1689 = vrot.slane %v1611, 1
        %v1690 = vsel %vm935, %v1688, %v1689
        %v1691 = vrot.slane %v1616, 1
        %v1692 = vsel %vm935, %v1689, %v1691
        %v1693 = vrot.slane %v1621, 1
        %v1694 = vrot.slane %v1626, 1
        %v1695 = vsel %vm935, %v1693, %v1694
        %v1696 = vrot.slane %v1631, 1
        %v1697 = vsel %vm935, %v1694, %v1696
        %1698 = vrot.lane.b32.xlu0 %v1660, 120
        %v1699 = vpop.permute.xlu0 %1698
        %1700 = vrot.lane.b32.xlu0 %v1662, 120
        %v1701 = vpop.permute.xlu0 %1700
        %1702 = vrot.lane.b32.xlu0 %v1665, 120
        %v1703 = vpop.permute.xlu0 %1702
        %1704 = vrot.lane.b32.xlu0 %v1667, 120
        %v1705 = vpop.permute.xlu0 %1704
        %1706 = vrot.lane.b32.xlu0 %v1670, 120
        %v1707 = vpop.permute.xlu0 %1706
        %1708 = vrot.lane.b32.xlu0 %v1672, 120
        %v1709 = vpop.permute.xlu0 %1708
        %1710 = vrot.lane.b32.xlu0 %v1675, 120
        %v1711 = vpop.permute.xlu0 %1710
        %1712 = vrot.lane.b32.xlu0 %v1677, 120
        %v1713 = vpop.permute.xlu0 %1712
        %1714 = vrot.lane.b32.xlu0 %v1680, 120
        %v1715 = vpop.permute.xlu0 %1714
        %1716 = vrot.lane.b32.xlu0 %v1682, 120
        %v1717 = vpop.permute.xlu0 %1716
        %1718 = vrot.lane.b32.xlu0 %v1685, 120
        %v1719 = vpop.permute.xlu0 %1718
        %1720 = vrot.lane.b32.xlu0 %v1687, 120
        %v1721 = vpop.permute.xlu0 %1720
        %1722 = vrot.lane.b32.xlu0 %v1690, 120
        %v1723 = vpop.permute.xlu0 %1722
        %1724 = vrot.lane.b32.xlu0 %v1692, 120
        %v1725 = vpop.permute.xlu0 %1724
        %1726 = vrot.lane.b32.xlu0 %v1695, 120
        %v1727 = vpop.permute.xlu0 %1726
        %1728 = vrot.lane.b32.xlu0 %v1697, 120
        %v1729 = vpop.permute.xlu0 %1728
        %v1746 = vadd.f32 %v1516, %v1699
        %v1747 = vadd.f32 %v1521, %v1701
        %v1748 = vadd.f32 %v1531, %v1703
        %v1749 = vadd.f32 %v1536, %v1705
        %v1750 = vadd.f32 %v1546, %v1707
        %v1751 = vadd.f32 %v1551, %v1709
        %v1752 = vadd.f32 %v1561, %v1711
        %v1753 = vadd.f32 %v1566, %v1713
        %v1754 = vadd.f32 %v1576, %v1715
        %v1755 = vadd.f32 %v1581, %v1717
        %v1756 = vadd.f32 %v1591, %v1719
        %v1757 = vadd.f32 %v1596, %v1721
        %v1758 = vadd.f32 %v1606, %v1723
        %v1759 = vadd.f32 %v1611, %v1725
        %v1760 = vadd.f32 %v1621, %v1727
        %v1761 = vadd.f32 %v1626, %v1729
        %1762 = vrot.lane.b32.xlu0 %v1661, 120
        %v1763 = vpop.permute.xlu0 %1762
        %1764 = vrot.lane.b32.xlu0 %v1666, 120
        %v1765 = vpop.permute.xlu0 %1764
        %1766 = vrot.lane.b32.xlu0 %v1671, 120
        %v1767 = vpop.permute.xlu0 %1766
        %1768 = vrot.lane.b32.xlu0 %v1676, 120
        %v1769 = vpop.permute.xlu0 %1768
        %1770 = vrot.lane.b32.xlu0 %v1681, 120
        %v1771 = vpop.permute.xlu0 %1770
        %1772 = vrot.lane.b32.xlu0 %v1686, 120
        %v1773 = vpop.permute.xlu0 %1772
        %1774 = vrot.lane.b32.xlu0 %v1691, 120
        %v1775 = vpop.permute.xlu0 %1774
        %1776 = vrot.lane.b32.xlu0 %v1696, 120
        %v1777 = vpop.permute.xlu0 %1776
        %v1786 = vadd.f32 %v1526, %v1763
        %v1787 = vadd.f32 %v1541, %v1765
        %v1788 = vadd.f32 %v1556, %v1767
        %v1789 = vadd.f32 %v1571, %v1769
        %v1790 = vadd.f32 %v1586, %v1771
        %v1791 = vadd.f32 %v1601, %v1773
        %v1792 = vadd.f32 %v1616, %v1775
        %v1793 = vadd.f32 %v1631, %v1777
        %v1818 = vrot.slane %v1746, 1
        %v1819 = vrot.slane %v1747, 1
        %v1820 = vsel %vm935, %v1818, %v1819
        %v1821 = vrot.slane %v1786, 1
        %v1822 = vsel %vm935, %v1819, %v1821
        %v1823 = vrot.slane %v1748, 1
        %v1824 = vrot.slane %v1749, 1
        %v1825 = vsel %vm935, %v1823, %v1824
        %v1826 = vrot.slane %v1787, 1
        %v1827 = vsel %vm935, %v1824, %v1826
        %v1828 = vrot.slane %v1750, 1
        %v1829 = vrot.slane %v1751, 1
        %v1830 = vsel %vm935, %v1828, %v1829
        %v1831 = vrot.slane %v1788, 1
        %v1832 = vsel %vm935, %v1829, %v1831
        %v1833 = vrot.slane %v1752, 1
        %v1834 = vrot.slane %v1753, 1
        %v1835 = vsel %vm935, %v1833, %v1834
        %v1836 = vrot.slane %v1789, 1
        %v1837 = vsel %vm935, %v1834, %v1836
        %v1838 = vrot.slane %v1754, 1
        %v1839 = vrot.slane %v1755, 1
        %v1840 = vsel %vm935, %v1838, %v1839
        %v1841 = vrot.slane %v1790, 1
        %v1842 = vsel %vm935, %v1839, %v1841
        %v1843 = vrot.slane %v1756, 1
        %v1844 = vrot.slane %v1757, 1
        %v1845 = vsel %vm935, %v1843, %v1844
        %v1846 = vrot.slane %v1791, 1
        %v1847 = vsel %vm935, %v1844, %v1846
        %v1848 = vrot.slane %v1758, 1
        %v1849 = vrot.slane %v1759, 1
        %v1850 = vsel %vm935, %v1848, %v1849
        %v1851 = vrot.slane %v1792, 1
        %v1852 = vsel %vm935, %v1849, %v1851
        %v1853 = vrot.slane %v1760, 1
        %v1854 = vrot.slane %v1761, 1
        %v1855 = vsel %vm935, %v1853, %v1854
        %v1856 = vrot.slane %v1793, 1
        %v1857 = vsel %vm935, %v1854, %v1856
        %v1874 = vsel %vm444, %v1746, %v1820
        %v1875 = vsel %vm444, %v1747, %v1822
        %v1876 = vsel %vm444, %v1748, %v1825
        %v1877 = vsel %vm444, %v1749, %v1827
        %v1878 = vsel %vm444, %v1750, %v1830
        %v1879 = vsel %vm444, %v1751, %v1832
        %v1880 = vsel %vm444, %v1752, %v1835
        %v1881 = vsel %vm444, %v1753, %v1837
        %v1882 = vsel %vm444, %v1754, %v1840
        %v1883 = vsel %vm444, %v1755, %v1842
        %v1884 = vsel %vm444, %v1756, %v1845
        %v1885 = vsel %vm444, %v1757, %v1847
        %v1886 = vsel %vm444, %v1758, %v1850
        %v1887 = vsel %vm444, %v1759, %v1852
        %v1888 = vsel %vm444, %v1760, %v1855
        %v1889 = vsel %vm444, %v1761, %v1857
        %v1890 = vadd.f32 %v1874, %v1172
        %v1891 = vadd.f32 %v1875, %v1172
        %v1892 = vadd.f32 %v1876, %v1172
        %v1893 = vadd.f32 %v1877, %v1172
        %v1894 = vadd.f32 %v1878, %v1172
        %v1895 = vadd.f32 %v1879, %v1172
        %v1896 = vadd.f32 %v1880, %v1172
        %v1897 = vadd.f32 %v1881, %v1172
        %v1898 = vadd.f32 %v1882, %v1172
        %v1899 = vadd.f32 %v1883, %v1172
        %v1900 = vadd.f32 %v1884, %v1172
        %v1901 = vadd.f32 %v1885, %v1172
        %v1902 = vadd.f32 %v1886, %v1172
        %v1903 = vadd.f32 %v1887, %v1172
        %v1904 = vadd.f32 %v1888, %v1172
        %v1905 = vadd.f32 %v1889, %v1172
        %s1906 = scalar_lea.vmem %s397, 16 [#allocation12]
        %1907 = vst.msk [vmem:[%s1906] sm:$0xff] %vm653, %v1890
        %1908 = vst.msk [vmem:[%s1906 + $0x8] sm:$0xff] %vm653, %v1891
        %1909 = vst.msk [vmem:[%s1906 + $0x20] sm:$0xff] %vm653, %v1892
        %1910 = vst.msk [vmem:[%s1906 + $0x28] sm:$0xff] %vm653, %v1893
        %1911 = vst.msk [vmem:[%s1906 + $0x40] sm:$0xff] %vm653, %v1894
        %1912 = vst.msk [vmem:[%s1906 + $0x48] sm:$0xff] %vm653, %v1895
        %1913 = vst.msk [vmem:[%s1906 + $0x60] sm:$0xff] %vm653, %v1896
        %1914 = vst.msk [vmem:[%s1906 + $0x68] sm:$0xff] %vm653, %v1897
        %1915 = vst.msk [vmem:[%s1906 + $0x80] sm:$0xff] %vm653, %v1898
        %1916 = vst.msk [vmem:[%s1906 + $0x88] sm:$0xff] %vm653, %v1899
        %1917 = vst.msk [vmem:[%s1906 + $0xa0] sm:$0xff] %vm653, %v1900
        %1918 = vst.msk [vmem:[%s1906 + $0xa8] sm:$0xff] %vm653, %v1901
        %1919 = vst.msk [vmem:[%s1906 + $0xc0] sm:$0xff] %vm653, %v1902
        %1920 = vst.msk [vmem:[%s1906 + $0xc8] sm:$0xff] %vm653, %v1903
        %1921 = vst.msk [vmem:[%s1906 + $0xe0] sm:$0xff] %vm653, %v1904
        %1922 = vst.msk [vmem:[%s1906 + $0xe8] sm:$0xff] %vm653, %v1905
        %s1923 = sand.u32 %s190, 1
        %s1924 = scalar_lea.sflag [#allocation5], %s1923
        %s1925 = sand.u32 %s190, 1
        %s1926 = smul.addr %s1925, 256
        %s1927 = scalar_lea.vmem [#allocation12], %s1926
        // Predicated region
        $region61: #{tpu_custom_call.1} parent=39 // pred_check
          %p1928 = pneg %p200
        $region62: #{tpu_custom_call.1} parent=39 // pred_check_branch
          %1930 = sbr.rel (%p1928) target = $region64
        $region63: #{tpu_custom_call.1} parent=39 // pred_region
          %s1931 = smul.u32 8, %s31
          %s1933 = ssub.s32 4096, 4096
          %1934 = vsyncadd %s1924, %s1933
          %s1935 = smul.addr %s1931, 4
          %s1936 = smul.addr %s30, 64
          %s1937 = sadd.s32 %s1935, %s1936
          %s1938 = smul.addr %s1937, 128
          %s1939 = scalar_lea.hbm %s5, %s1938
          %s1940 = sshll.u32 %s1927, 4
          %s1941 = int_to_ptr.vmem [resolvable:$true] %s1940
          %1946 = dma.vmem_to_hbm [thread:$0]  %s1941, 4096, %s1939, %s1924, 128, 128, 8
        $region64: #{tpu_custom_call.1} parent=39 // pred_fallthru
          _
      $region40: #{tpu_custom_call.1} parent=5 // pred_fallthru
        _
      %p1947 = scmp.le.s32.totalorder 2, %s21
      // Predicated region
      $region65: #{tpu_custom_call.1} parent=5 // pred_check
        %p1948 = pneg %p1947
      $region66: #{tpu_custom_call.1} parent=5 // pred_check_branch
        %1950 = sbr.rel (%p1948) target = $region68
      $region67: #{tpu_custom_call.1} parent=5 // pred_region
        %s1951 = ssub.s32 %s21, 2
        // Predicated region
        $region69: #{tpu_custom_call.1} parent=67 // pred_check
          %p1952 = pneg %p206
        $region70: #{tpu_custom_call.1} parent=67 // pred_check_branch
          %1954 = sbr.rel (%p1952) target = $region72
        $region71: #{tpu_custom_call.1} parent=67 // pred_region
          %s1955 = sand.u32 %s191, 1
          %s1956 = scalar_lea.sflag [#allocation5], %s1955
          %s1957 = sand.u32 %s191, 1
          %s1958 = smul.addr %s1957, 256
          %s1959 = scalar_lea.vmem [#allocation12], %s1958
          %1960 = dma.done %s1956, 4096
        $region72: #{tpu_custom_call.1} parent=67 // pred_fallthru
          _
      $region68: #{tpu_custom_call.1} parent=5 // pred_fallthru
        _
    $region6: #{tpu_custom_call.1} parent=1 // loop_footer
      %s25 = sadd.s32 1, %s21
    $region7: #{tpu_custom_call.1} parent=1 // loop_footer_branch
      %20 = sbr.rel target = $region3
    $region8: #{tpu_custom_call.1} parent=1 // loop_exit
      _
    %1961 = vsyncpa [#allocation4], 1
    %s1962 = scalar_lea.sflag [#allocation4], 1
    %1963 = vsyncpa %s1962, 1
    %1964 = vsyncpa [#allocation7], 1
    %s1965 = scalar_lea.sflag [#allocation7], 1
    %1966 = vsyncpa %s1965, 1
    %1967 = vsyncpa [#allocation10], 1
    %1968 = vsyncpa [#allocation5], 1
    %s1969 = scalar_lea.sflag [#allocation5], 1
    %1970 = vsyncpa %s1969, 1

</llo_original>
